<compile_context>
chip_gen: v7x
topology: tpu7x:2x2x1
jax: 0.10.0
libtpu: 0.0.40
codegen_flags: <defaults>
</compile_context>

<pallas_src>
import functools
import math

import jax
import jax.numpy as jnp
from jax import lax
from jax.experimental import pallas as pl
from jax.experimental.pallas import tpu as pltpu


def _round_up(x, m):
    return (x + m - 1) // m * m


# --------------------------- fused Pallas kernel ---------------------------
def _fused_feature_kernel(x_ref, w1_ref, b1_ref, w2_ref, b2_ref, m_ref, o_ref,
                          *, shifts, b_tile):
    """Two fused 'same' convolutions, per-tap MXU accumulation.

    x_ref : (B_TILE, C1p, Np)  stacked+padded [real; imag] input channels
    w1_ref: (K*K, C2p, C1p)    layer-1 weights, tap-major
    b1_ref: (C2p, 1)
    w2_ref: (K*K, C3p, C2p)    layer-2 weights, tap-major
    b2_ref: (C3p, 1)
    m_ref : (K*K, Np)          precomputed per-tap validity masks (resident)
    o_ref : (B_TILE, C3p, Np)
    """
    masks = m_ref[...]                                   # (K*K, Np)
    b1 = b1_ref[...]
    b2 = b2_ref[...]

    def conv(x, w_ref, bias):
        cout = w_ref.shape[1]
        n = x.shape[-1]
        acc = jnp.zeros((cout, n), jnp.float32)
        for t, shift in enumerate(shifts):
            m_t = masks[t:t + 1, :]                      # (1, Np)
            shifted = x if shift == 0 else pltpu.roll(x, shift=shift, axis=1)
            tap = shifted * m_t                          # (cin, Np)
            acc = acc + jnp.dot(w_ref[t], tap,
                                preferred_element_type=jnp.float32)
        return acc + bias                                # (cout, Np)

    for b in range(b_tile):
        x = x_ref[b].astype(jnp.float32)                 # (C1p, Np)
        y1 = conv(x, w1_ref, b1)                         # layer-1 stays on-chip
        y2 = conv(y1, w2_ref, b2)
        o_ref[b] = y2.astype(o_ref.dtype)


# ------------------------------- wrapper ------------------------------------
def _pack_layer(wr, wi, br, bi, cin_pad, K):
    """Fold complex-conv algebra into one real conv, pack weights tap-major.

    Equivalent real conv on stacked [real; imag; pad] channels.  Returns
    (w_taps, bias) with w_taps[ky*K + kx, o, c] == w_eq[o, c, ky, kx].
    """
    c_out, c_in = wr.shape[0], wr.shape[1]
    w_eq = jnp.concatenate(
        [jnp.concatenate([wr, -wi], axis=1),
         jnp.concatenate([wi, wr], axis=1)], axis=0)       # (2co, 2ci, K, K)
    b_eq = jnp.concatenate([br - bi, br + bi], axis=0)     # (2co,)
    cout_pad = _round_up(2 * c_out, 8)
    w_eq = jnp.pad(w_eq, ((0, cout_pad - 2 * c_out),
                          (0, cin_pad - 2 * c_in), (0, 0), (0, 0)))
    b_eq = jnp.pad(b_eq, (0, cout_pad - 2 * c_out))
    w_taps = w_eq.transpose(2, 3, 0, 1).reshape(K * K, cout_pad, cin_pad)
    return (w_taps.astype(jnp.float32),
            b_eq.reshape(cout_pad, 1).astype(jnp.float32))


def feature_extractor(x, params):
    """x: (B, C_in, H, W, 2) -> (B, C_out, H, W, 2). params: 2 layer tuples."""
    B, c_in, H, W, _ = x.shape
    (wr1, wi1, br1, bi1), (wr2, wi2, br2, bi2) = params
    c_mid, c_out = wr1.shape[0], wr2.shape[0]
    K = wr1.shape[2]
    pad = K // 2
    n = H * W
    n_pad = _round_up(n, 128)                   # lane-dense, unmasked stores

    c1p = _round_up(2 * c_in, 8)
    c2p = _round_up(2 * c_mid, 8)
    c3p = _round_up(2 * c_out, 8)

    # >=2 grid steps when possible (v7x has 2 TCs); the whole per-core batch
    # share is packed into a single step to amortize per-step overhead.
    num_steps = 2 if B >= 2 else 1
    b_tile = -(-B // num_steps)
    b_padded = num_steps * b_tile

    # Stacked [real; imag] channels, batch-major (NO batch/channel transpose),
    # lane-flattened to H*W and zero-padded to tile-aligned sizes.
    x_cat = jnp.concatenate([x[..., 0], x[..., 1]], axis=1)    # (B, 2ci, H, W)
    x_cat = jnp.pad(x_cat, ((0, b_padded - B), (0, c1p - 2 * c_in),
                            (0, 0), (0, 0)))
    x_flat = x_cat.reshape(b_padded, c1p, n)
    if n_pad > n:
        x_flat = jnp.pad(x_flat, ((0, 0), (0, 0), (0, n_pad - n)))

    # Per-tap validity masks + static lane shifts, computed once here.
    p_idx = jnp.arange(n_pad)
    row, col = p_idx // W, p_idx % W
    in_img = p_idx < n
    shifts, mask_rows = [], []
    for ky in range(K):
        for kx in range(K):
            dy, dx = ky - pad, kx - pad
            s = dy * W + dx
            shifts.append((-s) % n_pad)          # roll amount (static)
            mask_rows.append(in_img & (row + dy >= 0) & (row + dy < H) &
                             (col + dx >= 0) & (col + dx < W))
    masks = jnp.stack(mask_rows).astype(jnp.float32)           # (K*K, n_pad)

    w1, b1 = _pack_layer(wr1, wi1, br1, bi1, c1p, K)           # (K*K, c2p, c1p)
    w2, b2 = _pack_layer(wr2, wi2, br2, bi2, c2p, K)           # (K*K, c3p, c2p)

    kernel = functools.partial(_fused_feature_kernel,
                               shifts=tuple(shifts), b_tile=b_tile)

    out_flat = pl.pallas_call(
        kernel,
        out_shape=jax.ShapeDtypeStruct((b_padded, c3p, n_pad), jnp.float32),
        grid_spec=pltpu.PrefetchScalarGridSpec(
            num_scalar_prefetch=0,
            grid=(num_steps,),
            in_specs=[
                pl.BlockSpec((b_tile, c1p, n_pad), lambda g: (g, 0, 0)),
                pl.BlockSpec(w1.shape, lambda g: (0, 0, 0)),
                pl.BlockSpec(b1.shape, lambda g: (0, 0)),
                pl.BlockSpec(w2.shape, lambda g: (0, 0, 0)),
                pl.BlockSpec(b2.shape, lambda g: (0, 0)),
                pl.BlockSpec(masks.shape, lambda g: (0, 0)),
            ],
            out_specs=pl.BlockSpec((b_tile, c3p, n_pad), lambda g: (g, 0, 0)),
        ),
        compiler_params=pltpu.CompilerParams(
            dimension_semantics=("parallel",)),
    )(x_flat, w1, b1, w2, b2, masks)

    # Un-pad, split real/imag channel halves, restore [B, C, H, W, 2].
    out = out_flat[:B, :2 * c_out, :n].reshape(B, 2, c_out, H, W)
    return jnp.moveaxis(out, 1, -1)


# ---------------- reference (plain JAX) for verification ----------------
def _conv2d_ref(x, w, b, pad):
    y = lax.conv_general_dilated(
        x, w, window_strides=(1, 1), padding=((pad, pad), (pad, pad)),
        dimension_numbers=("NCHW", "OIHW", "NCHW"))
    return y + b[None, :, None, None]


def _complex_conv_ref(x, wr, wi, br, bi, pad):
    xr, xi = x[..., 0], x[..., 1]
    real = _conv2d_ref(xr, wr, br, pad) - _conv2d_ref(xi, wi, bi, pad)
    imag = _conv2d_ref(xi, wr, br, pad) + _conv2d_ref(xr, wi, bi, pad)
    return jnp.stack([real, imag], axis=-1)


def _feature_extractor_ref(x, params, pad):
    for (wr, wi, br, bi) in params:
        x = _complex_conv_ref(x, wr, wi, br, bi, pad)
    return x


# ---------------- deterministic parameter init (PyTorch-like) ----------------
def _init_conv(key, c_out, c_in, k):
    fan_in = c_in * k * k
    bound = 1.0 / math.sqrt(fan_in)
    kw, kb = jax.random.split(key)
    w = jax.random.uniform(kw, (c_out, c_in, k, k), jnp.float32, -bound, bound)
    b = jax.random.uniform(kb, (c_out,), jnp.float32, -bound, bound)
    return w, b


def make_params(key, in_ch, out_ch, k):
    keys = jax.random.split(key, 4)
    wr1, br1 = _init_conv(keys[0], out_ch, in_ch, k)
    wi1, bi1 = _init_conv(keys[1], out_ch, in_ch, k)
    wr2, br2 = _init_conv(keys[2], out_ch, out_ch, k)
    wi2, bi2 = _init_conv(keys[3], out_ch, out_ch, k)
    return [(wr1, wi1, br1, bi1), (wr2, wi2, br2, bi2)]


if __name__ == "__main__":
    B, C_IN, C_OUT, H, W, K = 2, 2, 4, 16, 16, 3
    key = jax.random.PRNGKey(0)
    kx, kp = jax.random.split(key)
    x = jax.random.normal(kx, (B, C_IN, H, W, 2), jnp.float32)
    params = make_params(kp, C_IN, C_OUT, K)

    out = jax.block_until_ready(feature_extractor(x, params))

    ref = _feature_extractor_ref(x, params, K // 2)
    assert out.shape == (B, C_OUT, H, W, 2), out.shape
    max_err = float(jnp.max(jnp.abs(out - ref)))
    assert jnp.allclose(out, ref, atol=1e-3, rtol=1e-3), max_err

    print("KERNEL_OK")
</pallas_src>

<mosaic_0001>
module attributes {stable_mosaic.version = 11 : i64} {
  func.func @_fused_feature_kernel(%arg0: i32, %arg1: memref<1x8x256xf32, #tpu.memory_space<vmem>>, %arg2: memref<9x8x8xf32, #tpu.memory_space<vmem>>, %arg3: memref<8x1xf32, #tpu.memory_space<vmem>>, %arg4: memref<9x8x8xf32, #tpu.memory_space<vmem>>, %arg5: memref<8x1xf32, #tpu.memory_space<vmem>>, %arg6: memref<9x256xf32, #tpu.memory_space<vmem>>, %arg7: memref<1x8x256xf32, #tpu.memory_space<vmem>>) attributes {dimension_semantics = [#tpu.dimension_semantics<parallel>], iteration_bounds = array<i64: 2>, scalar_prefetch = 0 : i64, scratch_operands = 0 : i64, tpu.core_type = #tpu.core_type<tc>, window_params = [{transform_indices = @transform_0, window_bounds = array<i64: 1, 8, 256>}, {pipeline_mode = #tpu.pipeline_mode<synchronous>, transform_indices = @transform_1, window_bounds = array<i64: 9, 8, 8>}, {pipeline_mode = #tpu.pipeline_mode<synchronous>, transform_indices = @transform_2, window_bounds = array<i64: 8, 1>}, {pipeline_mode = #tpu.pipeline_mode<synchronous>, transform_indices = @transform_3, window_bounds = array<i64: 9, 8, 8>}, {pipeline_mode = #tpu.pipeline_mode<synchronous>, transform_indices = @transform_4, window_bounds = array<i64: 8, 1>}, {pipeline_mode = #tpu.pipeline_mode<synchronous>, transform_indices = @transform_5, window_bounds = array<i64: 9, 256>}, {transform_indices = @transform_6, window_bounds = array<i64: 1, 8, 256>}]} {
    %c0 = arith.constant 0 : index
    %c0_0 = arith.constant 0 : index
    %0 = vector.load %arg6[%c0, %c0_0] : memref<9x256xf32, #tpu.memory_space<vmem>>, vector<9x256xf32>
    %c0_1 = arith.constant 0 : index
    %c0_2 = arith.constant 0 : index
    %1 = vector.load %arg3[%c0_1, %c0_2] : memref<8x1xf32, #tpu.memory_space<vmem>>, vector<8x1xf32>
    %c0_3 = arith.constant 0 : index
    %c0_4 = arith.constant 0 : index
    %2 = vector.load %arg5[%c0_3, %c0_4] : memref<8x1xf32, #tpu.memory_space<vmem>>, vector<8x1xf32>
    %c0_5 = arith.constant 0 : index
    %c0_6 = arith.constant 0 : index
    %c0_7 = arith.constant 0 : index
    %3 = vector.load %arg1[%c0_5, %c0_6, %c0_7] : memref<1x8x256xf32, #tpu.memory_space<vmem>>, vector<1x8x256xf32>
    %4 = vector.shape_cast %3 : vector<1x8x256xf32> to vector<8x256xf32>
    %cst = arith.constant 0.000000e+00 : f32
    %5 = vector.broadcast %cst : f32 to vector<8x256xf32>
    %6 = vector.extract_strided_slice %0 {offsets = [0, 0], sizes = [1, 256], strides = [1, 1]} : vector<9x256xf32> to vector<1x256xf32>
    %c17_i32 = arith.constant 17 : i32
    %7 = tpu.dynamic_rotate %4 by %c17_i32 dim 1 : vector<8x256xf32>, i32 -> vector<8x256xf32>
    %8 = vector.broadcast %6 : vector<1x256xf32> to vector<8x256xf32>
    %9 = arith.mulf %7, %8 : vector<8x256xf32>
    %c0_8 = arith.constant 0 : index
    %c0_9 = arith.constant 0 : index
    %c0_10 = arith.constant 0 : index
    %10 = vector.load %arg2[%c0_8, %c0_9, %c0_10] : memref<9x8x8xf32, #tpu.memory_space<vmem>>, vector<1x8x8xf32>
    %11 = vector.shape_cast %10 : vector<1x8x8xf32> to vector<8x8xf32>
    %cst_11 = arith.constant dense<0.000000e+00> : vector<8x256xf32>
    %12 = tpu.matmul %11, %9, %cst_11 {dimension_numbers = #tpu.dot_dimension_numbers<[1], [0], [0], [1], [0, 0, 1, 1], [], []>} : vector<8x8xf32>, vector<8x256xf32>, vector<8x256xf32> -> vector<8x256xf32>
    %13 = arith.addf %5, %12 : vector<8x256xf32>
    %14 = vector.extract_strided_slice %0 {offsets = [1, 0], sizes = [1, 256], strides = [1, 1]} : vector<9x256xf32> to vector<1x256xf32>
    %c16_i32 = arith.constant 16 : i32
    %15 = tpu.dynamic_rotate %4 by %c16_i32 dim 1 : vector<8x256xf32>, i32 -> vector<8x256xf32>
    %16 = vector.broadcast %14 : vector<1x256xf32> to vector<8x256xf32>
    %17 = arith.mulf %15, %16 : vector<8x256xf32>
    %c1 = arith.constant 1 : index
    %c0_12 = arith.constant 0 : index
    %c0_13 = arith.constant 0 : index
    %18 = vector.load %arg2[%c1, %c0_12, %c0_13] : memref<9x8x8xf32, #tpu.memory_space<vmem>>, vector<1x8x8xf32>
    %19 = vector.shape_cast %18 : vector<1x8x8xf32> to vector<8x8xf32>
    %cst_14 = arith.constant dense<0.000000e+00> : vector<8x256xf32>
    %20 = tpu.matmul %19, %17, %cst_14 {dimension_numbers = #tpu.dot_dimension_numbers<[1], [0], [0], [1], [0, 0, 1, 1], [], []>} : vector<8x8xf32>, vector<8x256xf32>, vector<8x256xf32> -> vector<8x256xf32>
    %21 = arith.addf %13, %20 : vector<8x256xf32>
    %22 = vector.extract_strided_slice %0 {offsets = [2, 0], sizes = [1, 256], strides = [1, 1]} : vector<9x256xf32> to vector<1x256xf32>
    %c15_i32 = arith.constant 15 : i32
    %23 = tpu.dynamic_rotate %4 by %c15_i32 dim 1 : vector<8x256xf32>, i32 -> vector<8x256xf32>
    %24 = vector.broadcast %22 : vector<1x256xf32> to vector<8x256xf32>
    %25 = arith.mulf %23, %24 : vector<8x256xf32>
    %c2 = arith.constant 2 : index
    %c0_15 = arith.constant 0 : index
    %c0_16 = arith.constant 0 : index
    %26 = vector.load %arg2[%c2, %c0_15, %c0_16] : memref<9x8x8xf32, #tpu.memory_space<vmem>>, vector<1x8x8xf32>
    %27 = vector.shape_cast %26 : vector<1x8x8xf32> to vector<8x8xf32>
    %cst_17 = arith.constant dense<0.000000e+00> : vector<8x256xf32>
    %28 = tpu.matmul %27, %25, %cst_17 {dimension_numbers = #tpu.dot_dimension_numbers<[1], [0], [0], [1], [0, 0, 1, 1], [], []>} : vector<8x8xf32>, vector<8x256xf32>, vector<8x256xf32> -> vector<8x256xf32>
    %29 = arith.addf %21, %28 : vector<8x256xf32>
    %30 = vector.extract_strided_slice %0 {offsets = [3, 0], sizes = [1, 256], strides = [1, 1]} : vector<9x256xf32> to vector<1x256xf32>
    %c1_i32 = arith.constant 1 : i32
    %31 = tpu.dynamic_rotate %4 by %c1_i32 dim 1 : vector<8x256xf32>, i32 -> vector<8x256xf32>
    %32 = vector.broadcast %30 : vector<1x256xf32> to vector<8x256xf32>
    %33 = arith.mulf %31, %32 : vector<8x256xf32>
    %c3 = arith.constant 3 : index
    %c0_18 = arith.constant 0 : index
    %c0_19 = arith.constant 0 : index
    %34 = vector.load %arg2[%c3, %c0_18, %c0_19] : memref<9x8x8xf32, #tpu.memory_space<vmem>>, vector<1x8x8xf32>
    %35 = vector.shape_cast %34 : vector<1x8x8xf32> to vector<8x8xf32>
    %cst_20 = arith.constant dense<0.000000e+00> : vector<8x256xf32>
    %36 = tpu.matmul %35, %33, %cst_20 {dimension_numbers = #tpu.dot_dimension_numbers<[1], [0], [0], [1], [0, 0, 1, 1], [], []>} : vector<8x8xf32>, vector<8x256xf32>, vector<8x256xf32> -> vector<8x256xf32>
    %37 = arith.addf %29, %36 : vector<8x256xf32>
    %38 = vector.extract_strided_slice %0 {offsets = [4, 0], sizes = [1, 256], strides = [1, 1]} : vector<9x256xf32> to vector<1x256xf32>
    %39 = vector.broadcast %38 : vector<1x256xf32> to vector<8x256xf32>
    %40 = arith.mulf %4, %39 : vector<8x256xf32>
    %c4 = arith.constant 4 : index
    %c0_21 = arith.constant 0 : index
    %c0_22 = arith.constant 0 : index
    %41 = vector.load %arg2[%c4, %c0_21, %c0_22] : memref<9x8x8xf32, #tpu.memory_space<vmem>>, vector<1x8x8xf32>
    %42 = vector.shape_cast %41 : vector<1x8x8xf32> to vector<8x8xf32>
    %cst_23 = arith.constant dense<0.000000e+00> : vector<8x256xf32>
    %43 = tpu.matmul %42, %40, %cst_23 {dimension_numbers = #tpu.dot_dimension_numbers<[1], [0], [0], [1], [0, 0, 1, 1], [], []>} : vector<8x8xf32>, vector<8x256xf32>, vector<8x256xf32> -> vector<8x256xf32>
    %44 = arith.addf %37, %43 : vector<8x256xf32>
    %45 = vector.extract_strided_slice %0 {offsets = [5, 0], sizes = [1, 256], strides = [1, 1]} : vector<9x256xf32> to vector<1x256xf32>
    %c255_i32 = arith.constant 255 : i32
    %46 = tpu.dynamic_rotate %4 by %c255_i32 dim 1 : vector<8x256xf32>, i32 -> vector<8x256xf32>
    %47 = vector.broadcast %45 : vector<1x256xf32> to vector<8x256xf32>
    %48 = arith.mulf %46, %47 : vector<8x256xf32>
    %c5 = arith.constant 5 : index
    %c0_24 = arith.constant 0 : index
    %c0_25 = arith.constant 0 : index
    %49 = vector.load %arg2[%c5, %c0_24, %c0_25] : memref<9x8x8xf32, #tpu.memory_space<vmem>>, vector<1x8x8xf32>
    %50 = vector.shape_cast %49 : vector<1x8x8xf32> to vector<8x8xf32>
    %cst_26 = arith.constant dense<0.000000e+00> : vector<8x256xf32>
    %51 = tpu.matmul %50, %48, %cst_26 {dimension_numbers = #tpu.dot_dimension_numbers<[1], [0], [0], [1], [0, 0, 1, 1], [], []>} : vector<8x8xf32>, vector<8x256xf32>, vector<8x256xf32> -> vector<8x256xf32>
    %52 = arith.addf %44, %51 : vector<8x256xf32>
    %53 = vector.extract_strided_slice %0 {offsets = [6, 0], sizes = [1, 256], strides = [1, 1]} : vector<9x256xf32> to vector<1x256xf32>
    %c241_i32 = arith.constant 241 : i32
    %54 = tpu.dynamic_rotate %4 by %c241_i32 dim 1 : vector<8x256xf32>, i32 -> vector<8x256xf32>
    %55 = vector.broadcast %53 : vector<1x256xf32> to vector<8x256xf32>
    %56 = arith.mulf %54, %55 : vector<8x256xf32>
    %c6 = arith.constant 6 : index
    %c0_27 = arith.constant 0 : index
    %c0_28 = arith.constant 0 : index
    %57 = vector.load %arg2[%c6, %c0_27, %c0_28] : memref<9x8x8xf32, #tpu.memory_space<vmem>>, vector<1x8x8xf32>
    %58 = vector.shape_cast %57 : vector<1x8x8xf32> to vector<8x8xf32>
    %cst_29 = arith.constant dense<0.000000e+00> : vector<8x256xf32>
    %59 = tpu.matmul %58, %56, %cst_29 {dimension_numbers = #tpu.dot_dimension_numbers<[1], [0], [0], [1], [0, 0, 1, 1], [], []>} : vector<8x8xf32>, vector<8x256xf32>, vector<8x256xf32> -> vector<8x256xf32>
    %60 = arith.addf %52, %59 : vector<8x256xf32>
    %61 = vector.extract_strided_slice %0 {offsets = [7, 0], sizes = [1, 256], strides = [1, 1]} : vector<9x256xf32> to vector<1x256xf32>
    %c240_i32 = arith.constant 240 : i32
    %62 = tpu.dynamic_rotate %4 by %c240_i32 dim 1 : vector<8x256xf32>, i32 -> vector<8x256xf32>
    %63 = vector.broadcast %61 : vector<1x256xf32> to vector<8x256xf32>
    %64 = arith.mulf %62, %63 : vector<8x256xf32>
    %c7 = arith.constant 7 : index
    %c0_30 = arith.constant 0 : index
    %c0_31 = arith.constant 0 : index
    %65 = vector.load %arg2[%c7, %c0_30, %c0_31] : memref<9x8x8xf32, #tpu.memory_space<vmem>>, vector<1x8x8xf32>
    %66 = vector.shape_cast %65 : vector<1x8x8xf32> to vector<8x8xf32>
    %cst_32 = arith.constant dense<0.000000e+00> : vector<8x256xf32>
    %67 = tpu.matmul %66, %64, %cst_32 {dimension_numbers = #tpu.dot_dimension_numbers<[1], [0], [0], [1], [0, 0, 1, 1], [], []>} : vector<8x8xf32>, vector<8x256xf32>, vector<8x256xf32> -> vector<8x256xf32>
    %68 = arith.addf %60, %67 : vector<8x256xf32>
    %69 = vector.extract_strided_slice %0 {offsets = [8, 0], sizes = [1, 256], strides = [1, 1]} : vector<9x256xf32> to vector<1x256xf32>
    %c239_i32 = arith.constant 239 : i32
    %70 = tpu.dynamic_rotate %4 by %c239_i32 dim 1 : vector<8x256xf32>, i32 -> vector<8x256xf32>
    %71 = vector.broadcast %69 : vector<1x256xf32> to vector<8x256xf32>
    %72 = arith.mulf %70, %71 : vector<8x256xf32>
    %c8 = arith.constant 8 : index
    %c0_33 = arith.constant 0 : index
    %c0_34 = arith.constant 0 : index
    %73 = vector.load %arg2[%c8, %c0_33, %c0_34] : memref<9x8x8xf32, #tpu.memory_space<vmem>>, vector<1x8x8xf32>
    %74 = vector.shape_cast %73 : vector<1x8x8xf32> to vector<8x8xf32>
    %cst_35 = arith.constant dense<0.000000e+00> : vector<8x256xf32>
    %75 = tpu.matmul %74, %72, %cst_35 {dimension_numbers = #tpu.dot_dimension_numbers<[1], [0], [0], [1], [0, 0, 1, 1], [], []>} : vector<8x8xf32>, vector<8x256xf32>, vector<8x256xf32> -> vector<8x256xf32>
    %76 = arith.addf %68, %75 : vector<8x256xf32>
    %77 = vector.broadcast %1 : vector<8x1xf32> to vector<8x256xf32>
    %78 = arith.addf %76, %77 : vector<8x256xf32>
    %cst_36 = arith.constant 0.000000e+00 : f32
    %79 = vector.broadcast %cst_36 : f32 to vector<8x256xf32>
    %80 = vector.extract_strided_slice %0 {offsets = [0, 0], sizes = [1, 256], strides = [1, 1]} : vector<9x256xf32> to vector<1x256xf32>
    %c17_i32_37 = arith.constant 17 : i32
    %81 = tpu.dynamic_rotate %78 by %c17_i32_37 dim 1 : vector<8x256xf32>, i32 -> vector<8x256xf32>
    %82 = vector.broadcast %80 : vector<1x256xf32> to vector<8x256xf32>
    %83 = arith.mulf %81, %82 : vector<8x256xf32>
    %c0_38 = arith.constant 0 : index
    %c0_39 = arith.constant 0 : index
    %c0_40 = arith.constant 0 : index
    %84 = vector.load %arg4[%c0_38, %c0_39, %c0_40] : memref<9x8x8xf32, #tpu.memory_space<vmem>>, vector<1x8x8xf32>
    %85 = vector.shape_cast %84 : vector<1x8x8xf32> to vector<8x8xf32>
    %cst_41 = arith.constant dense<0.000000e+00> : vector<8x256xf32>
    %86 = tpu.matmul %85, %83, %cst_41 {dimension_numbers = #tpu.dot_dimension_numbers<[1], [0], [0], [1], [0, 0, 1, 1], [], []>} : vector<8x8xf32>, vector<8x256xf32>, vector<8x256xf32> -> vector<8x256xf32>
    %87 = arith.addf %79, %86 : vector<8x256xf32>
    %88 = vector.extract_strided_slice %0 {offsets = [1, 0], sizes = [1, 256], strides = [1, 1]} : vector<9x256xf32> to vector<1x256xf32>
    %c16_i32_42 = arith.constant 16 : i32
    %89 = tpu.dynamic_rotate %78 by %c16_i32_42 dim 1 : vector<8x256xf32>, i32 -> vector<8x256xf32>
    %90 = vector.broadcast %88 : vector<1x256xf32> to vector<8x256xf32>
    %91 = arith.mulf %89, %90 : vector<8x256xf32>
    %c1_43 = arith.constant 1 : index
    %c0_44 = arith.constant 0 : index
    %c0_45 = arith.constant 0 : index
    %92 = vector.load %arg4[%c1_43, %c0_44, %c0_45] : memref<9x8x8xf32, #tpu.memory_space<vmem>>, vector<1x8x8xf32>
    %93 = vector.shape_cast %92 : vector<1x8x8xf32> to vector<8x8xf32>
    %cst_46 = arith.constant dense<0.000000e+00> : vector<8x256xf32>
    %94 = tpu.matmul %93, %91, %cst_46 {dimension_numbers = #tpu.dot_dimension_numbers<[1], [0], [0], [1], [0, 0, 1, 1], [], []>} : vector<8x8xf32>, vector<8x256xf32>, vector<8x256xf32> -> vector<8x256xf32>
    %95 = arith.addf %87, %94 : vector<8x256xf32>
    %96 = vector.extract_strided_slice %0 {offsets = [2, 0], sizes = [1, 256], strides = [1, 1]} : vector<9x256xf32> to vector<1x256xf32>
    %c15_i32_47 = arith.constant 15 : i32
    %97 = tpu.dynamic_rotate %78 by %c15_i32_47 dim 1 : vector<8x256xf32>, i32 -> vector<8x256xf32>
    %98 = vector.broadcast %96 : vector<1x256xf32> to vector<8x256xf32>
    %99 = arith.mulf %97, %98 : vector<8x256xf32>
    %c2_48 = arith.constant 2 : index
    %c0_49 = arith.constant 0 : index
    %c0_50 = arith.constant 0 : index
    %100 = vector.load %arg4[%c2_48, %c0_49, %c0_50] : memref<9x8x8xf32, #tpu.memory_space<vmem>>, vector<1x8x8xf32>
    %101 = vector.shape_cast %100 : vector<1x8x8xf32> to vector<8x8xf32>
    %cst_51 = arith.constant dense<0.000000e+00> : vector<8x256xf32>
    %102 = tpu.matmul %101, %99, %cst_51 {dimension_numbers = #tpu.dot_dimension_numbers<[1], [0], [0], [1], [0, 0, 1, 1], [], []>} : vector<8x8xf32>, vector<8x256xf32>, vector<8x256xf32> -> vector<8x256xf32>
    %103 = arith.addf %95, %102 : vector<8x256xf32>
    %104 = vector.extract_strided_slice %0 {offsets = [3, 0], sizes = [1, 256], strides = [1, 1]} : vector<9x256xf32> to vector<1x256xf32>
    %c1_i32_52 = arith.constant 1 : i32
    %105 = tpu.dynamic_rotate %78 by %c1_i32_52 dim 1 : vector<8x256xf32>, i32 -> vector<8x256xf32>
    %106 = vector.broadcast %104 : vector<1x256xf32> to vector<8x256xf32>
    %107 = arith.mulf %105, %106 : vector<8x256xf32>
    %c3_53 = arith.constant 3 : index
    %c0_54 = arith.constant 0 : index
    %c0_55 = arith.constant 0 : index
    %108 = vector.load %arg4[%c3_53, %c0_54, %c0_55] : memref<9x8x8xf32, #tpu.memory_space<vmem>>, vector<1x8x8xf32>
    %109 = vector.shape_cast %108 : vector<1x8x8xf32> to vector<8x8xf32>
    %cst_56 = arith.constant dense<0.000000e+00> : vector<8x256xf32>
    %110 = tpu.matmul %109, %107, %cst_56 {dimension_numbers = #tpu.dot_dimension_numbers<[1], [0], [0], [1], [0, 0, 1, 1], [], []>} : vector<8x8xf32>, vector<8x256xf32>, vector<8x256xf32> -> vector<8x256xf32>
    %111 = arith.addf %103, %110 : vector<8x256xf32>
    %112 = vector.extract_strided_slice %0 {offsets = [4, 0], sizes = [1, 256], strides = [1, 1]} : vector<9x256xf32> to vector<1x256xf32>
    %113 = vector.broadcast %112 : vector<1x256xf32> to vector<8x256xf32>
    %114 = arith.mulf %78, %113 : vector<8x256xf32>
    %c4_57 = arith.constant 4 : index
    %c0_58 = arith.constant 0 : index
    %c0_59 = arith.constant 0 : index
    %115 = vector.load %arg4[%c4_57, %c0_58, %c0_59] : memref<9x8x8xf32, #tpu.memory_space<vmem>>, vector<1x8x8xf32>
    %116 = vector.shape_cast %115 : vector<1x8x8xf32> to vector<8x8xf32>
    %cst_60 = arith.constant dense<0.000000e+00> : vector<8x256xf32>
    %117 = tpu.matmul %116, %114, %cst_60 {dimension_numbers = #tpu.dot_dimension_numbers<[1], [0], [0], [1], [0, 0, 1, 1], [], []>} : vector<8x8xf32>, vector<8x256xf32>, vector<8x256xf32> -> vector<8x256xf32>
    %118 = arith.addf %111, %117 : vector<8x256xf32>
    %119 = vector.extract_strided_slice %0 {offsets = [5, 0], sizes = [1, 256], strides = [1, 1]} : vector<9x256xf32> to vector<1x256xf32>
    %c255_i32_61 = arith.constant 255 : i32
    %120 = tpu.dynamic_rotate %78 by %c255_i32_61 dim 1 : vector<8x256xf32>, i32 -> vector<8x256xf32>
    %121 = vector.broadcast %119 : vector<1x256xf32> to vector<8x256xf32>
    %122 = arith.mulf %120, %121 : vector<8x256xf32>
    %c5_62 = arith.constant 5 : index
    %c0_63 = arith.constant 0 : index
    %c0_64 = arith.constant 0 : index
    %123 = vector.load %arg4[%c5_62, %c0_63, %c0_64] : memref<9x8x8xf32, #tpu.memory_space<vmem>>, vector<1x8x8xf32>
    %124 = vector.shape_cast %123 : vector<1x8x8xf32> to vector<8x8xf32>
    %cst_65 = arith.constant dense<0.000000e+00> : vector<8x256xf32>
    %125 = tpu.matmul %124, %122, %cst_65 {dimension_numbers = #tpu.dot_dimension_numbers<[1], [0], [0], [1], [0, 0, 1, 1], [], []>} : vector<8x8xf32>, vector<8x256xf32>, vector<8x256xf32> -> vector<8x256xf32>
    %126 = arith.addf %118, %125 : vector<8x256xf32>
    %127 = vector.extract_strided_slice %0 {offsets = [6, 0], sizes = [1, 256], strides = [1, 1]} : vector<9x256xf32> to vector<1x256xf32>
    %c241_i32_66 = arith.constant 241 : i32
    %128 = tpu.dynamic_rotate %78 by %c241_i32_66 dim 1 : vector<8x256xf32>, i32 -> vector<8x256xf32>
    %129 = vector.broadcast %127 : vector<1x256xf32> to vector<8x256xf32>
    %130 = arith.mulf %128, %129 : vector<8x256xf32>
    %c6_67 = arith.constant 6 : index
    %c0_68 = arith.constant 0 : index
    %c0_69 = arith.constant 0 : index
    %131 = vector.load %arg4[%c6_67, %c0_68, %c0_69] : memref<9x8x8xf32, #tpu.memory_space<vmem>>, vector<1x8x8xf32>
    %132 = vector.shape_cast %131 : vector<1x8x8xf32> to vector<8x8xf32>
    %cst_70 = arith.constant dense<0.000000e+00> : vector<8x256xf32>
    %133 = tpu.matmul %132, %130, %cst_70 {dimension_numbers = #tpu.dot_dimension_numbers<[1], [0], [0], [1], [0, 0, 1, 1], [], []>} : vector<8x8xf32>, vector<8x256xf32>, vector<8x256xf32> -> vector<8x256xf32>
    %134 = arith.addf %126, %133 : vector<8x256xf32>
    %135 = vector.extract_strided_slice %0 {offsets = [7, 0], sizes = [1, 256], strides = [1, 1]} : vector<9x256xf32> to vector<1x256xf32>
    %c240_i32_71 = arith.constant 240 : i32
    %136 = tpu.dynamic_rotate %78 by %c240_i32_71 dim 1 : vector<8x256xf32>, i32 -> vector<8x256xf32>
    %137 = vector.broadcast %135 : vector<1x256xf32> to vector<8x256xf32>
    %138 = arith.mulf %136, %137 : vector<8x256xf32>
    %c7_72 = arith.constant 7 : index
    %c0_73 = arith.constant 0 : index
    %c0_74 = arith.constant 0 : index
    %139 = vector.load %arg4[%c7_72, %c0_73, %c0_74] : memref<9x8x8xf32, #tpu.memory_space<vmem>>, vector<1x8x8xf32>
    %140 = vector.shape_cast %139 : vector<1x8x8xf32> to vector<8x8xf32>
    %cst_75 = arith.constant dense<0.000000e+00> : vector<8x256xf32>
    %141 = tpu.matmul %140, %138, %cst_75 {dimension_numbers = #tpu.dot_dimension_numbers<[1], [0], [0], [1], [0, 0, 1, 1], [], []>} : vector<8x8xf32>, vector<8x256xf32>, vector<8x256xf32> -> vector<8x256xf32>
    %142 = arith.addf %134, %141 : vector<8x256xf32>
    %143 = vector.extract_strided_slice %0 {offsets = [8, 0], sizes = [1, 256], strides = [1, 1]} : vector<9x256xf32> to vector<1x256xf32>
    %c239_i32_76 = arith.constant 239 : i32
    %144 = tpu.dynamic_rotate %78 by %c239_i32_76 dim 1 : vector<8x256xf32>, i32 -> vector<8x256xf32>
    %145 = vector.broadcast %143 : vector<1x256xf32> to vector<8x256xf32>
    %146 = arith.mulf %144, %145 : vector<8x256xf32>
    %c8_77 = arith.constant 8 : index
    %c0_78 = arith.constant 0 : index
    %c0_79 = arith.constant 0 : index
    %147 = vector.load %arg4[%c8_77, %c0_78, %c0_79] : memref<9x8x8xf32, #tpu.memory_space<vmem>>, vector<1x8x8xf32>
    %148 = vector.shape_cast %147 : vector<1x8x8xf32> to vector<8x8xf32>
    %cst_80 = arith.constant dense<0.000000e+00> : vector<8x256xf32>
    %149 = tpu.matmul %148, %146, %cst_80 {dimension_numbers = #tpu.dot_dimension_numbers<[1], [0], [0], [1], [0, 0, 1, 1], [], []>} : vector<8x8xf32>, vector<8x256xf32>, vector<8x256xf32> -> vector<8x256xf32>
    %150 = arith.addf %142, %149 : vector<8x256xf32>
    %151 = vector.broadcast %2 : vector<8x1xf32> to vector<8x256xf32>
    %152 = arith.addf %150, %151 : vector<8x256xf32>
    %c0_81 = arith.constant 0 : index
    %c0_82 = arith.constant 0 : index
    %c0_83 = arith.constant 0 : index
    %153 = vector.load %arg7[%c0_81, %c0_82, %c0_83] : memref<1x8x256xf32, #tpu.memory_space<vmem>>, vector<1x8x256xf32>
    %154 = vector.shape_cast %153 : vector<1x8x256xf32> to vector<8x256xf32>
    %155 = vector.shape_cast %152 : vector<8x256xf32> to vector<1x8x256xf32>
    tpu.vector_store %arg7[%c0_81, %c0_82, %c0_83], %155 {strides = array<i32>} : memref<1x8x256xf32, #tpu.memory_space<vmem>>, vector<1x8x256xf32>,
    return
  }
  func.func @transform_0(%arg0: i32) -> (i32, i32, i32) {
    %c0_i32 = arith.constant 0 : i32
    %c0_i32_0 = arith.constant 0 : i32
    %c0_i32_1 = arith.constant 0 : i32
    return %arg0, %c0_i32, %c0_i32_0 : i32, i32, i32
  }
  func.func @transform_1(%arg0: i32) -> (i32, i32, i32) {
    %c0_i32 = arith.constant 0 : i32
    %c0_i32_0 = arith.constant 0 : i32
    %c0_i32_1 = arith.constant 0 : i32
    %c0_i32_2 = arith.constant 0 : i32
    return %c0_i32, %c0_i32_0, %c0_i32_1 : i32, i32, i32
  }
  func.func @transform_2(%arg0: i32) -> (i32, i32) {
    %c0_i32 = arith.constant 0 : i32
    %c0_i32_0 = arith.constant 0 : i32
    %c0_i32_1 = arith.constant 0 : i32
    return %c0_i32, %c0_i32_0 : i32, i32
  }
  func.func @transform_3(%arg0: i32) -> (i32, i32, i32) {
    %c0_i32 = arith.constant 0 : i32
    %c0_i32_0 = arith.constant 0 : i32
    %c0_i32_1 = arith.constant 0 : i32
    %c0_i32_2 = arith.constant 0 : i32
    return %c0_i32, %c0_i32_0, %c0_i32_1 : i32, i32, i32
  }
  func.func @transform_4(%arg0: i32) -> (i32, i32) {
    %c0_i32 = arith.constant 0 : i32
    %c0_i32_0 = arith.constant 0 : i32
    %c0_i32_1 = arith.constant 0 : i32
    return %c0_i32, %c0_i32_0 : i32, i32
  }
  func.func @transform_5(%arg0: i32) -> (i32, i32) {
    %c0_i32 = arith.constant 0 : i32
    %c0_i32_0 = arith.constant 0 : i32
    %c0_i32_1 = arith.constant 0 : i32
    return %c0_i32, %c0_i32_0 : i32, i32
  }
  func.func @transform_6(%arg0: i32) -> (i32, i32, i32) {
    %c0_i32 = arith.constant 0 : i32
    %c0_i32_0 = arith.constant 0 : i32
    %c0_i32_1 = arith.constant 0 : i32
    return %arg0, %c0_i32, %c0_i32_0 : i32, i32, i32
  }
}

</mosaic_0001>

<llo_original>
// kernel: tpu_custom_call.1
$region0: #{tpu_custom_call.1}
  #allocation0 [shape = 'u32[]', space=smem, size = 0x4, offset = 0x4, fixed_abs, tag = 'smem constant byte address 0x4 - core index']
  #allocation1 [shape = 'u32[144,128]{1,0:T(1,128)}', space=vmem, size = 0x12000, scoped, tag = 'internal scratch']
  %s0 = inlined_call_operand.vmem [shape: f32[2,8,256], index: 0, kind: input, shape index: {}]
  %s1 = inlined_call_operand.vmem [shape: f32[9,8,8], index: 1, kind: input, shape index: {}]
  %s2 = inlined_call_operand.vmem [shape: f32[8,1], index: 2, kind: input, shape index: {}]
  %s3 = inlined_call_operand.vmem [shape: f32[9,8,8], index: 3, kind: input, shape index: {}]
  %s4 = inlined_call_operand.vmem [shape: f32[8,1], index: 4, kind: input, shape index: {}]
  %s5 = inlined_call_operand.vmem [shape: f32[9,256], index: 5, kind: input, shape index: {}]
  %s6 = inlined_call_operand.hbm [shape: f32[2,8,256], index: 6, kind: output, shape index: {}]
  %s7 = sld [smem:[#allocation0]]
  $region57: #{tpu_custom_call.1} parent=0
    _
  %s9 = ssub.s32 1, %s7
  %s10 = scalar_select 0, %s9, %s7
  $region1: #{tpu_custom_call.1} parent=0
    #allocation2 [shape = 'u8[16384]{0}', space=vmem, size = 0x4000, scoped, tag = 'output window, operand 0']
    #allocation3 [shape = 's32[2]{0}', space=sflag, size = 0x8, scoped, tag = 'scoped memory for tpu_custom_call.1']
    %11 = vsyncpa [#allocation3], 0
    %s12 = scalar_lea.sflag [#allocation3], 1
    %13 = vsyncpa %s12, 0
    loop: start=0, step=1, limit=4
    $region2: #{tpu_custom_call.1} parent=1 // loop_pre_header
      _
    $region3: #{tpu_custom_call.1} parent=1 // loop_header
      %s15 = sphi 0, %s19
      %p16 = scmp.ge.s32.totalorder %s15, 4
      %s25 = sphi 0, %s27
      %s28 = sphi 0, %s25
      %s29 = sphi 0, %s28
      %s45 = sphi 0, %s29
      %s49 = sphi 0, %s49
      %s51 = sphi 0, %s49
      %s52 = sphi 0, %s51
      %s66 = sphi 0, %s52
      %s70 = sphi 0, %s70
      %s72 = sphi 0, %s70
      %s73 = sphi 0, %s72
      %s87 = sphi 0, %s73
      %s91 = sphi 0, %s91
      %s93 = sphi 0, %s91
      %s94 = sphi 0, %s93
      %s108 = sphi 0, %s94
      %s112 = sphi 0, %s112
      %s114 = sphi 0, %s112
      %s115 = sphi 0, %s114
      %s129 = sphi 0, %s115
      %s133 = sphi 0, %s133
      %s135 = sphi 0, %s133
      %s136 = sphi 0, %s135
      %s150 = sphi 0, %s136
      %s156 = sphi 0, %s158
      %s159 = sphi 0, %s156
      %s160 = sphi 0, %s159
      %s176 = sphi 0, %s160
    $region4: #{tpu_custom_call.1} parent=1 // loop_header_branch
      %18 = sbr.rel (%p16) target = $region8
    $region5: #{tpu_custom_call.1} parent=1 // loop_body
      %s20 = ssub.s32 %s15, 1
      %s21 = ssub.s32 %s15, 2
      %s22 = sadd.s32 %s15, 1
      %s23 = ssub.s32 %s15, %s22
      %p24 = scmp.eq.s32.totalorder %s23, 0
      %s26 = sadd.s32 %s25, 1
      %s27 = scalar_select %p24, %s25, %s26
      %p30 = pneg %p24
      %p31 = scmp.eq.s32.totalorder %s15, 1
      %p32 = por %p30, %p31
      %p33 = scmp.ne.s32.totalorder %s25, %s28
      %p34 = scmp.eq.s32.totalorder %s15, 0
      %p35 = por %p33, %p34
      %p36 = scmp.ne.s32.totalorder %s25, %s28
      %p37 = scmp.eq.s32.totalorder %s20, 1
      %p38 = por %p36, %p37
      %p39 = scmp.ne.s32.totalorder %s28, %s29
      %p40 = scmp.eq.s32.totalorder %s20, 0
      %p41 = por %p39, %p40
      %p42 = scmp.ne.s32.totalorder %s28, %s29
      %p43 = scmp.eq.s32.totalorder %s21, 1
      %p44 = por %p42, %p43
      %p46 = scmp.ne.s32.totalorder %s29, %s45
      %p47 = scmp.eq.s32.totalorder %s21, 0
      %p48 = por %p46, %p47
      %s50 = sadd.s32 %s49, 1
      %p53 = scmp.eq.s32.totalorder %s15, 1
      %p54 = scmp.ne.s32.totalorder %s49, %s51
      %p55 = scmp.eq.s32.totalorder %s15, 0
      %p56 = por %p54, %p55
      %p57 = scmp.ne.s32.totalorder %s49, %s51
      %p58 = scmp.eq.s32.totalorder %s20, 1
      %p59 = por %p57, %p58
      %p60 = scmp.ne.s32.totalorder %s51, %s52
      %p61 = scmp.eq.s32.totalorder %s20, 0
      %p62 = por %p60, %p61
      %p63 = scmp.ne.s32.totalorder %s51, %s52
      %p64 = scmp.eq.s32.totalorder %s21, 1
      %p65 = por %p63, %p64
      %p67 = scmp.ne.s32.totalorder %s52, %s66
      %p68 = scmp.eq.s32.totalorder %s21, 0
      %p69 = por %p67, %p68
      %s71 = sadd.s32 %s70, 1
      %p74 = scmp.eq.s32.totalorder %s15, 1
      %p75 = scmp.ne.s32.totalorder %s70, %s72
      %p76 = scmp.eq.s32.totalorder %s15, 0
      %p77 = por %p75, %p76
      %p78 = scmp.ne.s32.totalorder %s70, %s72
      %p79 = scmp.eq.s32.totalorder %s20, 1
      %p80 = por %p78, %p79
      %p81 = scmp.ne.s32.totalorder %s72, %s73
      %p82 = scmp.eq.s32.totalorder %s20, 0
      %p83 = por %p81, %p82
      %p84 = scmp.ne.s32.totalorder %s72, %s73
      %p85 = scmp.eq.s32.totalorder %s21, 1
      %p86 = por %p84, %p85
      %p88 = scmp.ne.s32.totalorder %s73, %s87
      %p89 = scmp.eq.s32.totalorder %s21, 0
      %p90 = por %p88, %p89
      %s92 = sadd.s32 %s91, 1
      %p95 = scmp.eq.s32.totalorder %s15, 1
      %p96 = scmp.ne.s32.totalorder %s91, %s93
      %p97 = scmp.eq.s32.totalorder %s15, 0
      %p98 = por %p96, %p97
      %p99 = scmp.ne.s32.totalorder %s91, %s93
      %p100 = scmp.eq.s32.totalorder %s20, 1
      %p101 = por %p99, %p100
      %p102 = scmp.ne.s32.totalorder %s93, %s94
      %p103 = scmp.eq.s32.totalorder %s20, 0
      %p104 = por %p102, %p103
      %p105 = scmp.ne.s32.totalorder %s93, %s94
      %p106 = scmp.eq.s32.totalorder %s21, 1
      %p107 = por %p105, %p106
      %p109 = scmp.ne.s32.totalorder %s94, %s108
      %p110 = scmp.eq.s32.totalorder %s21, 0
      %p111 = por %p109, %p110
      %s113 = sadd.s32 %s112, 1
      %p116 = scmp.eq.s32.totalorder %s15, 1
      %p117 = scmp.ne.s32.totalorder %s112, %s114
      %p118 = scmp.eq.s32.totalorder %s15, 0
      %p119 = por %p117, %p118
      %p120 = scmp.ne.s32.totalorder %s112, %s114
      %p121 = scmp.eq.s32.totalorder %s20, 1
      %p122 = por %p120, %p121
      %p123 = scmp.ne.s32.totalorder %s114, %s115
      %p124 = scmp.eq.s32.totalorder %s20, 0
      %p125 = por %p123, %p124
      %p126 = scmp.ne.s32.totalorder %s114, %s115
      %p127 = scmp.eq.s32.totalorder %s21, 1
      %p128 = por %p126, %p127
      %p130 = scmp.ne.s32.totalorder %s115, %s129
      %p131 = scmp.eq.s32.totalorder %s21, 0
      %p132 = por %p130, %p131
      %s134 = sadd.s32 %s133, 1
      %p137 = scmp.eq.s32.totalorder %s15, 1
      %p138 = scmp.ne.s32.totalorder %s133, %s135
      %p139 = scmp.eq.s32.totalorder %s15, 0
      %p140 = por %p138, %p139
      %p141 = scmp.ne.s32.totalorder %s133, %s135
      %p142 = scmp.eq.s32.totalorder %s20, 1
      %p143 = por %p141, %p142
      %p144 = scmp.ne.s32.totalorder %s135, %s136
      %p145 = scmp.eq.s32.totalorder %s20, 0
      %p146 = por %p144, %p145
      %p147 = scmp.ne.s32.totalorder %s135, %s136
      %p148 = scmp.eq.s32.totalorder %s21, 1
      %p149 = por %p147, %p148
      %p151 = scmp.ne.s32.totalorder %s136, %s150
      %p152 = scmp.eq.s32.totalorder %s21, 0
      %p153 = por %p151, %p152
      %s154 = ssub.s32 %s15, %s22
      %p155 = scmp.eq.s32.totalorder %s154, 0
      %s157 = sadd.s32 %s156, 1
      %s158 = scalar_select %p155, %s156, %s157
      %p161 = pneg %p155
      %p162 = scmp.eq.s32.totalorder %s15, 1
      %p163 = por %p161, %p162
      %p164 = scmp.ne.s32.totalorder %s156, %s159
      %p165 = scmp.eq.s32.totalorder %s15, 0
      %p166 = por %p164, %p165
      %p167 = scmp.ne.s32.totalorder %s156, %s159
      %p168 = scmp.eq.s32.totalorder %s20, 1
      %p169 = por %p167, %p168
      %p170 = scmp.ne.s32.totalorder %s159, %s160
      %p171 = scmp.eq.s32.totalorder %s20, 0
      %p172 = por %p170, %p171
      %p173 = scmp.ne.s32.totalorder %s159, %s160
      %p174 = scmp.eq.s32.totalorder %s21, 1
      %p175 = por %p173, %p174
      %p177 = scmp.ne.s32.totalorder %s160, %s176
      %p178 = scmp.eq.s32.totalorder %s21, 0
      %p179 = por %p177, %p178
      %p180 = scmp.le.s32.totalorder 1, %s15
      %p181 = scmp.lt.s32.totalorder %s15, 3
      %p182 = pnand %p180, %p181
      %p183 = pneg %p182
      // Predicated region
      $region9: #{tpu_custom_call.1} parent=5 // pred_check
        _
      $region10: #{tpu_custom_call.1} parent=5 // pred_check_branch
        %185 = sbr.rel (%p182) target = $region12
      $region11: #{tpu_custom_call.1} parent=5 // pred_region
        %s186 = ssub.s32 %s15, 1
        // Predicated region
        $region13: #{tpu_custom_call.1} parent=11 // pred_check
          %p187 = pneg %p62
        $region14: #{tpu_custom_call.1} parent=11 // pred_check_branch
          %189 = sbr.rel (%p187) target = $region16
        $region15: #{tpu_custom_call.1} parent=11 // pred_region
          _
        $region16: #{tpu_custom_call.1} parent=11 // pred_fallthru
          _
        // Predicated region
        $region17: #{tpu_custom_call.1} parent=11 // pred_check
          %p190 = pneg %p83
        $region18: #{tpu_custom_call.1} parent=11 // pred_check_branch
          %192 = sbr.rel (%p190) target = $region20
        $region19: #{tpu_custom_call.1} parent=11 // pred_region
          _
        $region20: #{tpu_custom_call.1} parent=11 // pred_fallthru
          _
        // Predicated region
        $region21: #{tpu_custom_call.1} parent=11 // pred_check
          %p193 = pneg %p104
        $region22: #{tpu_custom_call.1} parent=11 // pred_check_branch
          %195 = sbr.rel (%p193) target = $region24
        $region23: #{tpu_custom_call.1} parent=11 // pred_region
          _
        $region24: #{tpu_custom_call.1} parent=11 // pred_fallthru
          _
        // Predicated region
        $region25: #{tpu_custom_call.1} parent=11 // pred_check
          %p196 = pneg %p125
        $region26: #{tpu_custom_call.1} parent=11 // pred_check_branch
          %198 = sbr.rel (%p196) target = $region28
        $region27: #{tpu_custom_call.1} parent=11 // pred_region
          _
        $region28: #{tpu_custom_call.1} parent=11 // pred_fallthru
          _
        // Predicated region
        $region29: #{tpu_custom_call.1} parent=11 // pred_check
          %p199 = pneg %p146
        $region30: #{tpu_custom_call.1} parent=11 // pred_check_branch
          %201 = sbr.rel (%p199) target = $region32
        $region31: #{tpu_custom_call.1} parent=11 // pred_region
          _
        $region32: #{tpu_custom_call.1} parent=11 // pred_fallthru
          _
      $region12: #{tpu_custom_call.1} parent=5 // pred_fallthru
        _
      %p202 = scmp.lt.s32.totalorder %s15, 2
      // Predicated region
      $region33: #{tpu_custom_call.1} parent=5 // pred_check
        %p203 = pneg %p202
      $region34: #{tpu_custom_call.1} parent=5 // pred_check_branch
        %205 = sbr.rel (%p203) target = $region36
      $region35: #{tpu_custom_call.1} parent=5 // pred_region
        // Predicated region
        $region37: #{tpu_custom_call.1} parent=35 // pred_check
          %p206 = pneg %p35
        $region38: #{tpu_custom_call.1} parent=35 // pred_check_branch
          %208 = sbr.rel (%p206) target = $region40
        $region39: #{tpu_custom_call.1} parent=35 // pred_region
          %p209 = scmp.lt.s32.totalorder %s15, 1
          %s210 = scalar_select %p209, %s15, 1
          %s211 = smul.addr %s210, 2
          %s212 = smul.addr %s211, 8
          %s213 = scalar_lea.vmem %s0, %s212
        $region40: #{tpu_custom_call.1} parent=35 // pred_fallthru
          _
      $region36: #{tpu_custom_call.1} parent=5 // pred_fallthru
        _
      %p214 = scmp.le.s32.totalorder 1, %s15
      %p215 = scmp.lt.s32.totalorder %s15, 3
      %p216 = pnand %p214, %p215
      %p217 = pneg %p216
      // Predicated region
      $region41: #{tpu_custom_call.1} parent=5 // pred_check
        _
      $region42: #{tpu_custom_call.1} parent=5 // pred_check_branch
        %219 = sbr.rel (%p216) target = $region44
      $region43: #{tpu_custom_call.1} parent=5 // pred_region
        %s220 = ssub.s32 %s15, 1
        %p221 = scmp.lt.s32.totalorder %s20, 1
        %s222 = scalar_select %p221, %s20, 1
        %s223 = smul.addr %s222, 2
        %s224 = smul.addr %s223, 8
        %s225 = scalar_lea.vmem %s0, %s224
        %p226 = pneg %p41
        %p227 = pneg %p38
        %p228 = pneg %p62
        %p229 = pneg %p59
        %p230 = pneg %p83
        %p231 = pneg %p80
        %p232 = pneg %p104
        %p233 = pneg %p101
        %p234 = pneg %p125
        %p235 = pneg %p122
        %p236 = pneg %p146
        %p237 = pneg %p143
        %p238 = pneg %p172
        %p239 = pneg %p169
        %s240 = sand.u32 %s159, 1
        %s241 = scalar_lea.sflag [#allocation3], %s240
        %s242 = sand.u32 %s159, 1
        %s243 = smul.addr %s242, 16
        %s244 = scalar_lea.vmem [#allocation2], %s243
        %p245 = scmp.lt.s32.totalorder %s20, 1
        %s246 = scalar_select %p245, %s20, 1
        %s247 = smul.addr %s246, 2
        %s248 = smul.addr %s247, 8
        %s249 = scalar_lea.vmem %s0, %s248
        %v250 = vld [vmem:[%s5] sm:$0xff]
        %v251 = vld [vmem:[%s5 + $0x8] sm:$0xff]
        %v252 = vld [vmem:[%s5 + $0x10] sm:$0x1]
        %v253 = vld [vmem:[%s5 + $0x18] sm:$0x1]
        %v254 = vld [vmem:[%s2] sm:$0xff]
        %v255 = vld [vmem:[%s4] sm:$0xff]
        %v256 = vld [vmem:[%s249] sm:$0xff]
        %v257 = vld [vmem:[%s249 + $0x8] sm:$0xff]
        %258 = vrot.lane.b32.xlu0 %v256, 17
        %v259 = vpop.permute.xlu0 %258
        %260 = vrot.lane.b32.xlu0 %v257, 17
        %v261 = vpop.permute.xlu0 %260
        %v262 = vlaneseq
        %v263 = vand.u32 %v262, 127
        %vm264 = vcmp.lt.s32.totalorder %v263, 17
        %v265 = vsel %vm264, %v259, %v261
        %v266 = vsel %vm264, %v261, %v259
        %v267 = vlaneseq
        %v268 = vshrl.u32 %v267, 7
        %v269 = vsub.s32 0, %v268
        %v270 = vrot.slane %v250, %v269
        %v271 = vlaneseq
        %v272 = vshrl.u32 %v271, 7
        %v273 = vsub.s32 0, %v272
        %v274 = vrot.slane %v251, %v273
        %v275 = vmul.f32 %v266, %v270
        %v276 = vmul.f32 %v265, %v274
        %v277 = vld [vmem:[%s1] sm:$0xff]
        %278 = vrot.lane.b32.xlu0 %v256, 16
        %v279 = vpop.permute.xlu0 %278
        %280 = vrot.lane.b32.xlu0 %v257, 16
        %v281 = vpop.permute.xlu0 %280
        %vm282 = vcmp.lt.s32.totalorder %v263, 16
        %v283 = vsel %vm282, %v279, %v281
        %v284 = vsel %vm282, %v281, %v279
        %v285 = vlaneseq
        %v286 = vshrl.u32 %v285, 7
        %v287 = vsub.s32 1, %v286
        %v288 = vrot.slane %v250, %v287
        %v289 = vlaneseq
        %v290 = vshrl.u32 %v289, 7
        %v291 = vsub.s32 1, %v290
        %v292 = vrot.slane %v251, %v291
        %v293 = vmul.f32 %v284, %v288
        %v294 = vmul.f32 %v283, %v292
        %s295 = scalar_lea.vmem %s1, 8
        %v296 = vld [vmem:[%s295] sm:$0xff]
        %vm297 = vcmask 64512
        %v299 = vsel %vm297, %v296, 0
        %301 = vmatprep.subr.mxu0 %v294
        %302 = vmatpush1.msra.mxu0 %v293
        %303 = vmatprep.subr.mxu0 0.0
        %304 = vmatpush1.msra.mxu0 0.0
        %305 = vmatprep.subr.mxu0 0.0
        %306 = vmatpush1.msra.mxu0 0.0
        %307 = vmatprep.subr.mxu0 0.0
        %308 = vmatpush1.msra.mxu0 0.0
        %309 = vmatprep.subr.mxu0 0.0
        %310 = vmatpush1.msra.mxu0 0.0
        %311 = vmatprep.subr.mxu0 0.0
        %312 = vmatpush1.msra.mxu0 0.0
        %313 = vmatprep.subr.mxu0 0.0
        %314 = vmatpush1.msra.mxu0 0.0
        %315 = vmatprep.subr.mxu0 0.0
        %316 = vmatpush1.msra.mxu0 0.0
        %317 = vmatprep.subr.mxu0 0.0
        %318 = vmatpush1.msra.mxu0 0.0
        %319 = vmatprep.subr.mxu0 0.0
        %320 = vmatpush1.msra.mxu0 0.0
        %321 = vmatprep.subr.mxu0 0.0
        %322 = vmatpush1.msra.mxu0 0.0
        %323 = vmatprep.subr.mxu0 0.0
        %324 = vmatpush1.msra.mxu0 0.0
        %325 = vmatprep.subr.mxu0 0.0
        %326 = vmatpush1.msra.mxu0 0.0
        %327 = vmatprep.subr.mxu0 0.0
        %328 = vmatpush1.msra.mxu0 0.0
        %329 = vmatprep.subr.mxu0 0.0
        %330 = vmatpush1.msra.mxu0 0.0
        %331 = vmatprep.subr.mxu0 0.0
        %332 = vmatpush1.msra.mxu0 0.0
        %333 = vmatprep.subr.mxu0 0.0
        %334 = vmatpush1.msra.mxu0 0.0
        %335 = vmatprep.subr.mxu0 0.0
        %336 = vmatpush1.msra.mxu0 0.0
        %337 = vmatprep.subr.mxu0 0.0
        %338 = vmatpush1.msra.mxu0 0.0
        %339 = vmatprep.subr.mxu0 0.0
        %340 = vmatpush1.msra.mxu0 0.0
        %341 = vmatprep.subr.mxu0 0.0
        %342 = vmatpush1.msra.mxu0 0.0
        %343 = vmatprep.subr.mxu0 0.0
        %344 = vmatpush1.msra.mxu0 0.0
        %345 = vmatprep.subr.mxu0 0.0
        %346 = vmatpush1.msra.mxu0 0.0
        %347 = vmatprep.subr.mxu0 0.0
        %348 = vmatpush1.msra.mxu0 0.0
        %349 = vmatprep.subr.mxu0 0.0
        %350 = vmatpush1.msra.mxu0 0.0
        %351 = vmatprep.subr.mxu0 0.0
        %352 = vmatpush1.msra.mxu0 0.0
        %353 = vmatprep.subr.mxu0 0.0
        %354 = vmatpush1.msra.mxu0 0.0
        %355 = vmatprep.subr.mxu0 0.0
        %356 = vmatpush1.msra.mxu0 0.0
        %357 = vmatprep.subr.mxu0 0.0
        %358 = vmatpush1.msra.mxu0 0.0
        %359 = vmatprep.subr.mxu0 0.0
        %360 = vmatpush1.msra.mxu0 0.0
        %361 = vmatprep.subr.mxu0 0.0
        %362 = vmatpush1.msra.mxu0 0.0
        %363 = vmatprep.subr.mxu0 0.0
        %364 = vmatpush1.msra.mxu0 0.0
        %365 = vmatprep.mubr.f32.mxu0 0.0
        %366 = vmatmul.mubr.f32.gmra.mrb[0].mxu0 %v299
        %v367 = vpop.f32.mrb[0].mxu0
        %v368 = vadd.f32 0.0, %v367
        %v369 = vpop.f32.mrb[0].mxu0
        %v370 = vadd.f32 0.0, %v369
        %371 = vdwg.mxu0
        %v373 = vsel %vm297, %v277, 0
        %375 = vmatprep.subr.mxu0 %v276
        %376 = vmatpush1.msra.mxu0 %v275
        %377 = vmatprep.subr.mxu0 0.0
        %378 = vmatpush1.msra.mxu0 0.0
        %379 = vmatprep.subr.mxu0 0.0
        %380 = vmatpush1.msra.mxu0 0.0
        %381 = vmatprep.subr.mxu0 0.0
        %382 = vmatpush1.msra.mxu0 0.0
        %383 = vmatprep.subr.mxu0 0.0
        %384 = vmatpush1.msra.mxu0 0.0
        %385 = vmatprep.subr.mxu0 0.0
        %386 = vmatpush1.msra.mxu0 0.0
        %387 = vmatprep.subr.mxu0 0.0
        %388 = vmatpush1.msra.mxu0 0.0
        %389 = vmatprep.subr.mxu0 0.0
        %390 = vmatpush1.msra.mxu0 0.0
        %391 = vmatprep.subr.mxu0 0.0
        %392 = vmatpush1.msra.mxu0 0.0
        %393 = vmatprep.subr.mxu0 0.0
        %394 = vmatpush1.msra.mxu0 0.0
        %395 = vmatprep.subr.mxu0 0.0
        %396 = vmatpush1.msra.mxu0 0.0
        %397 = vmatprep.subr.mxu0 0.0
        %398 = vmatpush1.msra.mxu0 0.0
        %399 = vmatprep.subr.mxu0 0.0
        %400 = vmatpush1.msra.mxu0 0.0
        %401 = vmatprep.subr.mxu0 0.0
        %402 = vmatpush1.msra.mxu0 0.0
        %403 = vmatprep.subr.mxu0 0.0
        %404 = vmatpush1.msra.mxu0 0.0
        %405 = vmatprep.subr.mxu0 0.0
        %406 = vmatpush1.msra.mxu0 0.0
        %407 = vmatprep.subr.mxu0 0.0
        %408 = vmatpush1.msra.mxu0 0.0
        %409 = vmatprep.subr.mxu0 0.0
        %410 = vmatpush1.msra.mxu0 0.0
        %411 = vmatprep.subr.mxu0 0.0
        %412 = vmatpush1.msra.mxu0 0.0
        %413 = vmatprep.subr.mxu0 0.0
        %414 = vmatpush1.msra.mxu0 0.0
        %415 = vmatprep.subr.mxu0 0.0
        %416 = vmatpush1.msra.mxu0 0.0
        %417 = vmatprep.subr.mxu0 0.0
        %418 = vmatpush1.msra.mxu0 0.0
        %419 = vmatprep.subr.mxu0 0.0
        %420 = vmatpush1.msra.mxu0 0.0
        %421 = vmatprep.subr.mxu0 0.0
        %422 = vmatpush1.msra.mxu0 0.0
        %423 = vmatprep.subr.mxu0 0.0
        %424 = vmatpush1.msra.mxu0 0.0
        %425 = vmatprep.subr.mxu0 0.0
        %426 = vmatpush1.msra.mxu0 0.0
        %427 = vmatprep.subr.mxu0 0.0
        %428 = vmatpush1.msra.mxu0 0.0
        %429 = vmatprep.subr.mxu0 0.0
        %430 = vmatpush1.msra.mxu0 0.0
        %431 = vmatprep.subr.mxu0 0.0
        %432 = vmatpush1.msra.mxu0 0.0
        %433 = vmatprep.subr.mxu0 0.0
        %434 = vmatpush1.msra.mxu0 0.0
        %435 = vmatprep.subr.mxu0 0.0
        %436 = vmatpush1.msra.mxu0 0.0
        %437 = vmatprep.subr.mxu0 0.0
        %438 = vmatpush1.msra.mxu0 0.0
        %439 = vmatprep.mubr.f32.mxu0 0.0
        %440 = vmatmul.mubr.f32.gmra.mrb[0].mxu0 %v373
        %v441 = vpop.f32.mrb[0].mxu0
        %v442 = vadd.f32 %v368, %v441
        %v443 = vpop.f32.mrb[0].mxu0
        %v444 = vadd.f32 %v370, %v443
        %445 = vdwg.mxu0
        %446 = vrot.lane.b32.xlu0 %v256, 15
        %v447 = vpop.permute.xlu0 %446
        %448 = vrot.lane.b32.xlu0 %v257, 15
        %v449 = vpop.permute.xlu0 %448
        %vm450 = vcmp.lt.s32.totalorder %v263, 15
        %v451 = vsel %vm450, %v447, %v449
        %v452 = vsel %vm450, %v449, %v447
        %v453 = vlaneseq
        %v454 = vshrl.u32 %v453, 7
        %v455 = vsub.s32 2, %v454
        %v456 = vrot.slane %v250, %v455
        %v457 = vlaneseq
        %v458 = vshrl.u32 %v457, 7
        %v459 = vsub.s32 2, %v458
        %v460 = vrot.slane %v251, %v459
        %v461 = vmul.f32 %v452, %v456
        %v462 = vmul.f32 %v451, %v460
        %s463 = scalar_lea.vmem %s1, 16
        %v464 = vld [vmem:[%s463] sm:$0xff]
        %v466 = vsel %vm297, %v464, 0
        %468 = vmatprep.subr.mxu0 %v462
        %469 = vmatpush1.msra.mxu0 %v461
        %470 = vmatprep.subr.mxu0 0.0
        %471 = vmatpush1.msra.mxu0 0.0
        %472 = vmatprep.subr.mxu0 0.0
        %473 = vmatpush1.msra.mxu0 0.0
        %474 = vmatprep.subr.mxu0 0.0
        %475 = vmatpush1.msra.mxu0 0.0
        %476 = vmatprep.subr.mxu0 0.0
        %477 = vmatpush1.msra.mxu0 0.0
        %478 = vmatprep.subr.mxu0 0.0
        %479 = vmatpush1.msra.mxu0 0.0
        %480 = vmatprep.subr.mxu0 0.0
        %481 = vmatpush1.msra.mxu0 0.0
        %482 = vmatprep.subr.mxu0 0.0
        %483 = vmatpush1.msra.mxu0 0.0
        %484 = vmatprep.subr.mxu0 0.0
        %485 = vmatpush1.msra.mxu0 0.0
        %486 = vmatprep.subr.mxu0 0.0
        %487 = vmatpush1.msra.mxu0 0.0
        %488 = vmatprep.subr.mxu0 0.0
        %489 = vmatpush1.msra.mxu0 0.0
        %490 = vmatprep.subr.mxu0 0.0
        %491 = vmatpush1.msra.mxu0 0.0
        %492 = vmatprep.subr.mxu0 0.0
        %493 = vmatpush1.msra.mxu0 0.0
        %494 = vmatprep.subr.mxu0 0.0
        %495 = vmatpush1.msra.mxu0 0.0
        %496 = vmatprep.subr.mxu0 0.0
        %497 = vmatpush1.msra.mxu0 0.0
        %498 = vmatprep.subr.mxu0 0.0
        %499 = vmatpush1.msra.mxu0 0.0
        %500 = vmatprep.subr.mxu0 0.0
        %501 = vmatpush1.msra.mxu0 0.0
        %502 = vmatprep.subr.mxu0 0.0
        %503 = vmatpush1.msra.mxu0 0.0
        %504 = vmatprep.subr.mxu0 0.0
        %505 = vmatpush1.msra.mxu0 0.0
        %506 = vmatprep.subr.mxu0 0.0
        %507 = vmatpush1.msra.mxu0 0.0
        %508 = vmatprep.subr.mxu0 0.0
        %509 = vmatpush1.msra.mxu0 0.0
        %510 = vmatprep.subr.mxu0 0.0
        %511 = vmatpush1.msra.mxu0 0.0
        %512 = vmatprep.subr.mxu0 0.0
        %513 = vmatpush1.msra.mxu0 0.0
        %514 = vmatprep.subr.mxu0 0.0
        %515 = vmatpush1.msra.mxu0 0.0
        %516 = vmatprep.subr.mxu0 0.0
        %517 = vmatpush1.msra.mxu0 0.0
        %518 = vmatprep.subr.mxu0 0.0
        %519 = vmatpush1.msra.mxu0 0.0
        %520 = vmatprep.subr.mxu0 0.0
        %521 = vmatpush1.msra.mxu0 0.0
        %522 = vmatprep.subr.mxu0 0.0
        %523 = vmatpush1.msra.mxu0 0.0
        %524 = vmatprep.subr.mxu0 0.0
        %525 = vmatpush1.msra.mxu0 0.0
        %526 = vmatprep.subr.mxu0 0.0
        %527 = vmatpush1.msra.mxu0 0.0
        %528 = vmatprep.subr.mxu0 0.0
        %529 = vmatpush1.msra.mxu0 0.0
        %530 = vmatprep.subr.mxu0 0.0
        %531 = vmatpush1.msra.mxu0 0.0
        %532 = vmatprep.mubr.f32.mxu0 0.0
        %533 = vmatmul.mubr.f32.gmra.mrb[0].mxu0 %v466
        %v534 = vpop.f32.mrb[0].mxu0
        %v535 = vadd.f32 0.0, %v534
        %v536 = vpop.f32.mrb[0].mxu0
        %v537 = vadd.f32 0.0, %v536
        %538 = vdwg.mxu0
        %v539 = vadd.f32 %v442, %v535
        %v540 = vadd.f32 %v444, %v537
        %541 = vrot.lane.b32.xlu0 %v256, 1
        %v542 = vpop.permute.xlu0 %541
        %543 = vrot.lane.b32.xlu0 %v257, 1
        %v544 = vpop.permute.xlu0 %543
        %vm545 = vcmp.lt.s32.totalorder %v263, 1
        %v546 = vsel %vm545, %v542, %v544
        %v547 = vsel %vm545, %v544, %v542
        %v548 = vlaneseq
        %v549 = vshrl.u32 %v548, 7
        %v550 = vsub.s32 3, %v549
        %v551 = vrot.slane %v250, %v550
        %v552 = vlaneseq
        %v553 = vshrl.u32 %v552, 7
        %v554 = vsub.s32 3, %v553
        %v555 = vrot.slane %v251, %v554
        %v556 = vmul.f32 %v547, %v551
        %v557 = vmul.f32 %v546, %v555
        %s558 = scalar_lea.vmem %s1, 24
        %v559 = vld [vmem:[%s558] sm:$0xff]
        %v561 = vsel %vm297, %v559, 0
        %563 = vmatprep.subr.mxu0 %v557
        %564 = vmatpush1.msra.mxu0 %v556
        %565 = vmatprep.subr.mxu0 0.0
        %566 = vmatpush1.msra.mxu0 0.0
        %567 = vmatprep.subr.mxu0 0.0
        %568 = vmatpush1.msra.mxu0 0.0
        %569 = vmatprep.subr.mxu0 0.0
        %570 = vmatpush1.msra.mxu0 0.0
        %571 = vmatprep.subr.mxu0 0.0
        %572 = vmatpush1.msra.mxu0 0.0
        %573 = vmatprep.subr.mxu0 0.0
        %574 = vmatpush1.msra.mxu0 0.0
        %575 = vmatprep.subr.mxu0 0.0
        %576 = vmatpush1.msra.mxu0 0.0
        %577 = vmatprep.subr.mxu0 0.0
        %578 = vmatpush1.msra.mxu0 0.0
        %579 = vmatprep.subr.mxu0 0.0
        %580 = vmatpush1.msra.mxu0 0.0
        %581 = vmatprep.subr.mxu0 0.0
        %582 = vmatpush1.msra.mxu0 0.0
        %583 = vmatprep.subr.mxu0 0.0
        %584 = vmatpush1.msra.mxu0 0.0
        %585 = vmatprep.subr.mxu0 0.0
        %586 = vmatpush1.msra.mxu0 0.0
        %587 = vmatprep.subr.mxu0 0.0
        %588 = vmatpush1.msra.mxu0 0.0
        %589 = vmatprep.subr.mxu0 0.0
        %590 = vmatpush1.msra.mxu0 0.0
        %591 = vmatprep.subr.mxu0 0.0
        %592 = vmatpush1.msra.mxu0 0.0
        %593 = vmatprep.subr.mxu0 0.0
        %594 = vmatpush1.msra.mxu0 0.0
        %595 = vmatprep.subr.mxu0 0.0
        %596 = vmatpush1.msra.mxu0 0.0
        %597 = vmatprep.subr.mxu0 0.0
        %598 = vmatpush1.msra.mxu0 0.0
        %599 = vmatprep.subr.mxu0 0.0
        %600 = vmatpush1.msra.mxu0 0.0
        %601 = vmatprep.subr.mxu0 0.0
        %602 = vmatpush1.msra.mxu0 0.0
        %603 = vmatprep.subr.mxu0 0.0
        %604 = vmatpush1.msra.mxu0 0.0
        %605 = vmatprep.subr.mxu0 0.0
        %606 = vmatpush1.msra.mxu0 0.0
        %607 = vmatprep.subr.mxu0 0.0
        %608 = vmatpush1.msra.mxu0 0.0
        %609 = vmatprep.subr.mxu0 0.0
        %610 = vmatpush1.msra.mxu0 0.0
        %611 = vmatprep.subr.mxu0 0.0
        %612 = vmatpush1.msra.mxu0 0.0
        %613 = vmatprep.subr.mxu0 0.0
        %614 = vmatpush1.msra.mxu0 0.0
        %615 = vmatprep.subr.mxu0 0.0
        %616 = vmatpush1.msra.mxu0 0.0
        %617 = vmatprep.subr.mxu0 0.0
        %618 = vmatpush1.msra.mxu0 0.0
        %619 = vmatprep.subr.mxu0 0.0
        %620 = vmatpush1.msra.mxu0 0.0
        %621 = vmatprep.subr.mxu0 0.0
        %622 = vmatpush1.msra.mxu0 0.0
        %623 = vmatprep.subr.mxu0 0.0
        %624 = vmatpush1.msra.mxu0 0.0
        %625 = vmatprep.subr.mxu0 0.0
        %626 = vmatpush1.msra.mxu0 0.0
        %627 = vmatprep.mubr.f32.mxu0 0.0
        %628 = vmatmul.mubr.f32.gmra.mrb[0].mxu0 %v561
        %v629 = vpop.f32.mrb[0].mxu0
        %v630 = vadd.f32 0.0, %v629
        %v631 = vpop.f32.mrb[0].mxu0
        %v632 = vadd.f32 0.0, %v631
        %633 = vdwg.mxu0
        %v634 = vadd.f32 %v539, %v630
        %v635 = vadd.f32 %v540, %v632
        %v636 = vlaneseq
        %v637 = vshrl.u32 %v636, 7
        %v638 = vsub.s32 4, %v637
        %v639 = vrot.slane %v250, %v638
        %v640 = vlaneseq
        %v641 = vshrl.u32 %v640, 7
        %v642 = vsub.s32 4, %v641
        %v643 = vrot.slane %v251, %v642
        %v644 = vmul.f32 %v256, %v639
        %v645 = vmul.f32 %v257, %v643
        %s646 = scalar_lea.vmem %s1, 32
        %v647 = vld [vmem:[%s646] sm:$0xff]
        %v649 = vsel %vm297, %v647, 0
        %651 = vmatprep.subr.mxu0 %v645
        %652 = vmatpush1.msra.mxu0 %v644
        %653 = vmatprep.subr.mxu0 0.0
        %654 = vmatpush1.msra.mxu0 0.0
        %655 = vmatprep.subr.mxu0 0.0
        %656 = vmatpush1.msra.mxu0 0.0
        %657 = vmatprep.subr.mxu0 0.0
        %658 = vmatpush1.msra.mxu0 0.0
        %659 = vmatprep.subr.mxu0 0.0
        %660 = vmatpush1.msra.mxu0 0.0
        %661 = vmatprep.subr.mxu0 0.0
        %662 = vmatpush1.msra.mxu0 0.0
        %663 = vmatprep.subr.mxu0 0.0
        %664 = vmatpush1.msra.mxu0 0.0
        %665 = vmatprep.subr.mxu0 0.0
        %666 = vmatpush1.msra.mxu0 0.0
        %667 = vmatprep.subr.mxu0 0.0
        %668 = vmatpush1.msra.mxu0 0.0
        %669 = vmatprep.subr.mxu0 0.0
        %670 = vmatpush1.msra.mxu0 0.0
        %671 = vmatprep.subr.mxu0 0.0
        %672 = vmatpush1.msra.mxu0 0.0
        %673 = vmatprep.subr.mxu0 0.0
        %674 = vmatpush1.msra.mxu0 0.0
        %675 = vmatprep.subr.mxu0 0.0
        %676 = vmatpush1.msra.mxu0 0.0
        %677 = vmatprep.subr.mxu0 0.0
        %678 = vmatpush1.msra.mxu0 0.0
        %679 = vmatprep.subr.mxu0 0.0
        %680 = vmatpush1.msra.mxu0 0.0
        %681 = vmatprep.subr.mxu0 0.0
        %682 = vmatpush1.msra.mxu0 0.0
        %683 = vmatprep.subr.mxu0 0.0
        %684 = vmatpush1.msra.mxu0 0.0
        %685 = vmatprep.subr.mxu0 0.0
        %686 = vmatpush1.msra.mxu0 0.0
        %687 = vmatprep.subr.mxu0 0.0
        %688 = vmatpush1.msra.mxu0 0.0
        %689 = vmatprep.subr.mxu0 0.0
        %690 = vmatpush1.msra.mxu0 0.0
        %691 = vmatprep.subr.mxu0 0.0
        %692 = vmatpush1.msra.mxu0 0.0
        %693 = vmatprep.subr.mxu0 0.0
        %694 = vmatpush1.msra.mxu0 0.0
        %695 = vmatprep.subr.mxu0 0.0
        %696 = vmatpush1.msra.mxu0 0.0
        %697 = vmatprep.subr.mxu0 0.0
        %698 = vmatpush1.msra.mxu0 0.0
        %699 = vmatprep.subr.mxu0 0.0
        %700 = vmatpush1.msra.mxu0 0.0
        %701 = vmatprep.subr.mxu0 0.0
        %702 = vmatpush1.msra.mxu0 0.0
        %703 = vmatprep.subr.mxu0 0.0
        %704 = vmatpush1.msra.mxu0 0.0
        %705 = vmatprep.subr.mxu0 0.0
        %706 = vmatpush1.msra.mxu0 0.0
        %707 = vmatprep.subr.mxu0 0.0
        %708 = vmatpush1.msra.mxu0 0.0
        %709 = vmatprep.subr.mxu0 0.0
        %710 = vmatpush1.msra.mxu0 0.0
        %711 = vmatprep.subr.mxu0 0.0
        %712 = vmatpush1.msra.mxu0 0.0
        %713 = vmatprep.subr.mxu0 0.0
        %714 = vmatpush1.msra.mxu0 0.0
        %715 = vmatprep.mubr.f32.mxu0 0.0
        %716 = vmatmul.mubr.f32.gmra.mrb[0].mxu0 %v649
        %v717 = vpop.f32.mrb[0].mxu0
        %v718 = vadd.f32 0.0, %v717
        %v719 = vpop.f32.mrb[0].mxu0
        %v720 = vadd.f32 0.0, %v719
        %721 = vdwg.mxu0
        %v722 = vadd.f32 %v634, %v718
        %v723 = vadd.f32 %v635, %v720
        %724 = vrot.lane.b32.xlu0 %v256, 127
        %v725 = vpop.permute.xlu0 %724
        %726 = vrot.lane.b32.xlu0 %v257, 127
        %v727 = vpop.permute.xlu0 %726
        %vm728 = vcmp.lt.s32.totalorder %v263, 127
        %v729 = vsel %vm728, %v725, %v727
        %v730 = vsel %vm728, %v727, %v725
        %v731 = vlaneseq
        %v732 = vshrl.u32 %v731, 7
        %v733 = vsub.s32 5, %v732
        %v734 = vrot.slane %v250, %v733
        %v735 = vlaneseq
        %v736 = vshrl.u32 %v735, 7
        %v737 = vsub.s32 5, %v736
        %v738 = vrot.slane %v251, %v737
        %v739 = vmul.f32 %v729, %v734
        %v740 = vmul.f32 %v730, %v738
        %s741 = scalar_lea.vmem %s1, 40
        %v742 = vld [vmem:[%s741] sm:$0xff]
        %v744 = vsel %vm297, %v742, 0
        %746 = vmatprep.subr.mxu0 %v740
        %747 = vmatpush1.msra.mxu0 %v739
        %748 = vmatprep.subr.mxu0 0.0
        %749 = vmatpush1.msra.mxu0 0.0
        %750 = vmatprep.subr.mxu0 0.0
        %751 = vmatpush1.msra.mxu0 0.0
        %752 = vmatprep.subr.mxu0 0.0
        %753 = vmatpush1.msra.mxu0 0.0
        %754 = vmatprep.subr.mxu0 0.0
        %755 = vmatpush1.msra.mxu0 0.0
        %756 = vmatprep.subr.mxu0 0.0
        %757 = vmatpush1.msra.mxu0 0.0
        %758 = vmatprep.subr.mxu0 0.0
        %759 = vmatpush1.msra.mxu0 0.0
        %760 = vmatprep.subr.mxu0 0.0
        %761 = vmatpush1.msra.mxu0 0.0
        %762 = vmatprep.subr.mxu0 0.0
        %763 = vmatpush1.msra.mxu0 0.0
        %764 = vmatprep.subr.mxu0 0.0
        %765 = vmatpush1.msra.mxu0 0.0
        %766 = vmatprep.subr.mxu0 0.0
        %767 = vmatpush1.msra.mxu0 0.0
        %768 = vmatprep.subr.mxu0 0.0
        %769 = vmatpush1.msra.mxu0 0.0
        %770 = vmatprep.subr.mxu0 0.0
        %771 = vmatpush1.msra.mxu0 0.0
        %772 = vmatprep.subr.mxu0 0.0
        %773 = vmatpush1.msra.mxu0 0.0
        %774 = vmatprep.subr.mxu0 0.0
        %775 = vmatpush1.msra.mxu0 0.0
        %776 = vmatprep.subr.mxu0 0.0
        %777 = vmatpush1.msra.mxu0 0.0
        %778 = vmatprep.subr.mxu0 0.0
        %779 = vmatpush1.msra.mxu0 0.0
        %780 = vmatprep.subr.mxu0 0.0
        %781 = vmatpush1.msra.mxu0 0.0
        %782 = vmatprep.subr.mxu0 0.0
        %783 = vmatpush1.msra.mxu0 0.0
        %784 = vmatprep.subr.mxu0 0.0
        %785 = vmatpush1.msra.mxu0 0.0
        %786 = vmatprep.subr.mxu0 0.0
        %787 = vmatpush1.msra.mxu0 0.0
        %788 = vmatprep.subr.mxu0 0.0
        %789 = vmatpush1.msra.mxu0 0.0
        %790 = vmatprep.subr.mxu0 0.0
        %791 = vmatpush1.msra.mxu0 0.0
        %792 = vmatprep.subr.mxu0 0.0
        %793 = vmatpush1.msra.mxu0 0.0
        %794 = vmatprep.subr.mxu0 0.0
        %795 = vmatpush1.msra.mxu0 0.0
        %796 = vmatprep.subr.mxu0 0.0
        %797 = vmatpush1.msra.mxu0 0.0
        %798 = vmatprep.subr.mxu0 0.0
        %799 = vmatpush1.msra.mxu0 0.0
        %800 = vmatprep.subr.mxu0 0.0
        %801 = vmatpush1.msra.mxu0 0.0
        %802 = vmatprep.subr.mxu0 0.0
        %803 = vmatpush1.msra.mxu0 0.0
        %804 = vmatprep.subr.mxu0 0.0
        %805 = vmatpush1.msra.mxu0 0.0
        %806 = vmatprep.subr.mxu0 0.0
        %807 = vmatpush1.msra.mxu0 0.0
        %808 = vmatprep.subr.mxu0 0.0
        %809 = vmatpush1.msra.mxu0 0.0
        %810 = vmatprep.mubr.f32.mxu0 0.0
        %811 = vmatmul.mubr.f32.gmra.mrb[0].mxu0 %v744
        %v812 = vpop.f32.mrb[0].mxu0
        %v813 = vadd.f32 0.0, %v812
        %v814 = vpop.f32.mrb[0].mxu0
        %v815 = vadd.f32 0.0, %v814
        %816 = vdwg.mxu0
        %v817 = vadd.f32 %v722, %v813
        %v818 = vadd.f32 %v723, %v815
        %819 = vrot.lane.b32.xlu0 %v256, 113
        %v820 = vpop.permute.xlu0 %819
        %821 = vrot.lane.b32.xlu0 %v257, 113
        %v822 = vpop.permute.xlu0 %821
        %vm823 = vcmp.lt.s32.totalorder %v263, 113
        %v824 = vsel %vm823, %v820, %v822
        %v825 = vsel %vm823, %v822, %v820
        %v826 = vlaneseq
        %v827 = vshrl.u32 %v826, 7
        %v828 = vsub.s32 6, %v827
        %v829 = vrot.slane %v250, %v828
        %v830 = vlaneseq
        %v831 = vshrl.u32 %v830, 7
        %v832 = vsub.s32 6, %v831
        %v833 = vrot.slane %v251, %v832
        %v834 = vmul.f32 %v824, %v829
        %v835 = vmul.f32 %v825, %v833
        %s836 = scalar_lea.vmem %s1, 48
        %v837 = vld [vmem:[%s836] sm:$0xff]
        %v839 = vsel %vm297, %v837, 0
        %841 = vmatprep.subr.mxu0 %v835
        %842 = vmatpush1.msra.mxu0 %v834
        %843 = vmatprep.subr.mxu0 0.0
        %844 = vmatpush1.msra.mxu0 0.0
        %845 = vmatprep.subr.mxu0 0.0
        %846 = vmatpush1.msra.mxu0 0.0
        %847 = vmatprep.subr.mxu0 0.0
        %848 = vmatpush1.msra.mxu0 0.0
        %849 = vmatprep.subr.mxu0 0.0
        %850 = vmatpush1.msra.mxu0 0.0
        %851 = vmatprep.subr.mxu0 0.0
        %852 = vmatpush1.msra.mxu0 0.0
        %853 = vmatprep.subr.mxu0 0.0
        %854 = vmatpush1.msra.mxu0 0.0
        %855 = vmatprep.subr.mxu0 0.0
        %856 = vmatpush1.msra.mxu0 0.0
        %857 = vmatprep.subr.mxu0 0.0
        %858 = vmatpush1.msra.mxu0 0.0
        %859 = vmatprep.subr.mxu0 0.0
        %860 = vmatpush1.msra.mxu0 0.0
        %861 = vmatprep.subr.mxu0 0.0
        %862 = vmatpush1.msra.mxu0 0.0
        %863 = vmatprep.subr.mxu0 0.0
        %864 = vmatpush1.msra.mxu0 0.0
        %865 = vmatprep.subr.mxu0 0.0
        %866 = vmatpush1.msra.mxu0 0.0
        %867 = vmatprep.subr.mxu0 0.0
        %868 = vmatpush1.msra.mxu0 0.0
        %869 = vmatprep.subr.mxu0 0.0
        %870 = vmatpush1.msra.mxu0 0.0
        %871 = vmatprep.subr.mxu0 0.0
        %872 = vmatpush1.msra.mxu0 0.0
        %873 = vmatprep.subr.mxu0 0.0
        %874 = vmatpush1.msra.mxu0 0.0
        %875 = vmatprep.subr.mxu0 0.0
        %876 = vmatpush1.msra.mxu0 0.0
        %877 = vmatprep.subr.mxu0 0.0
        %878 = vmatpush1.msra.mxu0 0.0
        %879 = vmatprep.subr.mxu0 0.0
        %880 = vmatpush1.msra.mxu0 0.0
        %881 = vmatprep.subr.mxu0 0.0
        %882 = vmatpush1.msra.mxu0 0.0
        %883 = vmatprep.subr.mxu0 0.0
        %884 = vmatpush1.msra.mxu0 0.0
        %885 = vmatprep.subr.mxu0 0.0
        %886 = vmatpush1.msra.mxu0 0.0
        %887 = vmatprep.subr.mxu0 0.0
        %888 = vmatpush1.msra.mxu0 0.0
        %889 = vmatprep.subr.mxu0 0.0
        %890 = vmatpush1.msra.mxu0 0.0
        %891 = vmatprep.subr.mxu0 0.0
        %892 = vmatpush1.msra.mxu0 0.0
        %893 = vmatprep.subr.mxu0 0.0
        %894 = vmatpush1.msra.mxu0 0.0
        %895 = vmatprep.subr.mxu0 0.0
        %896 = vmatpush1.msra.mxu0 0.0
        %897 = vmatprep.subr.mxu0 0.0
        %898 = vmatpush1.msra.mxu0 0.0
        %899 = vmatprep.subr.mxu0 0.0
        %900 = vmatpush1.msra.mxu0 0.0
        %901 = vmatprep.subr.mxu0 0.0
        %902 = vmatpush1.msra.mxu0 0.0
        %903 = vmatprep.subr.mxu0 0.0
        %904 = vmatpush1.msra.mxu0 0.0
        %905 = vmatprep.mubr.f32.mxu0 0.0
        %906 = vmatmul.mubr.f32.gmra.mrb[0].mxu0 %v839
        %v907 = vpop.f32.mrb[0].mxu0
        %v908 = vadd.f32 0.0, %v907
        %v909 = vpop.f32.mrb[0].mxu0
        %v910 = vadd.f32 0.0, %v909
        %911 = vdwg.mxu0
        %v912 = vadd.f32 %v817, %v908
        %v913 = vadd.f32 %v818, %v910
        %914 = vrot.lane.b32.xlu0 %v256, 112
        %v915 = vpop.permute.xlu0 %914
        %916 = vrot.lane.b32.xlu0 %v257, 112
        %v917 = vpop.permute.xlu0 %916
        %vm918 = vcmp.lt.s32.totalorder %v263, 112
        %v919 = vsel %vm918, %v915, %v917
        %v920 = vsel %vm918, %v917, %v915
        %v921 = vlaneseq
        %v922 = vshrl.u32 %v921, 7
        %v923 = vsub.s32 7, %v922
        %v924 = vrot.slane %v250, %v923
        %v925 = vlaneseq
        %v926 = vshrl.u32 %v925, 7
        %v927 = vsub.s32 7, %v926
        %v928 = vrot.slane %v251, %v927
        %v929 = vmul.f32 %v919, %v924
        %v930 = vmul.f32 %v920, %v928
        %s931 = scalar_lea.vmem %s1, 56
        %v932 = vld [vmem:[%s931] sm:$0xff]
        %v934 = vsel %vm297, %v932, 0
        %936 = vmatprep.subr.mxu0 %v930
        %937 = vmatpush1.msra.mxu0 %v929
        %938 = vmatprep.subr.mxu0 0.0
        %939 = vmatpush1.msra.mxu0 0.0
        %940 = vmatprep.subr.mxu0 0.0
        %941 = vmatpush1.msra.mxu0 0.0
        %942 = vmatprep.subr.mxu0 0.0
        %943 = vmatpush1.msra.mxu0 0.0
        %944 = vmatprep.subr.mxu0 0.0
        %945 = vmatpush1.msra.mxu0 0.0
        %946 = vmatprep.subr.mxu0 0.0
        %947 = vmatpush1.msra.mxu0 0.0
        %948 = vmatprep.subr.mxu0 0.0
        %949 = vmatpush1.msra.mxu0 0.0
        %950 = vmatprep.subr.mxu0 0.0
        %951 = vmatpush1.msra.mxu0 0.0
        %952 = vmatprep.subr.mxu0 0.0
        %953 = vmatpush1.msra.mxu0 0.0
        %954 = vmatprep.subr.mxu0 0.0
        %955 = vmatpush1.msra.mxu0 0.0
        %956 = vmatprep.subr.mxu0 0.0
        %957 = vmatpush1.msra.mxu0 0.0
        %958 = vmatprep.subr.mxu0 0.0
        %959 = vmatpush1.msra.mxu0 0.0
        %960 = vmatprep.subr.mxu0 0.0
        %961 = vmatpush1.msra.mxu0 0.0
        %962 = vmatprep.subr.mxu0 0.0
        %963 = vmatpush1.msra.mxu0 0.0
        %964 = vmatprep.subr.mxu0 0.0
        %965 = vmatpush1.msra.mxu0 0.0
        %966 = vmatprep.subr.mxu0 0.0
        %967 = vmatpush1.msra.mxu0 0.0
        %968 = vmatprep.subr.mxu0 0.0
        %969 = vmatpush1.msra.mxu0 0.0
        %970 = vmatprep.subr.mxu0 0.0
        %971 = vmatpush1.msra.mxu0 0.0
        %972 = vmatprep.subr.mxu0 0.0
        %973 = vmatpush1.msra.mxu0 0.0
        %974 = vmatprep.subr.mxu0 0.0
        %975 = vmatpush1.msra.mxu0 0.0
        %976 = vmatprep.subr.mxu0 0.0
        %977 = vmatpush1.msra.mxu0 0.0
        %978 = vmatprep.subr.mxu0 0.0
        %979 = vmatpush1.msra.mxu0 0.0
        %980 = vmatprep.subr.mxu0 0.0
        %981 = vmatpush1.msra.mxu0 0.0
        %982 = vmatprep.subr.mxu0 0.0
        %983 = vmatpush1.msra.mxu0 0.0
        %984 = vmatprep.subr.mxu0 0.0
        %985 = vmatpush1.msra.mxu0 0.0
        %986 = vmatprep.subr.mxu0 0.0
        %987 = vmatpush1.msra.mxu0 0.0
        %988 = vmatprep.subr.mxu0 0.0
        %989 = vmatpush1.msra.mxu0 0.0
        %990 = vmatprep.subr.mxu0 0.0
        %991 = vmatpush1.msra.mxu0 0.0
        %992 = vmatprep.subr.mxu0 0.0
        %993 = vmatpush1.msra.mxu0 0.0
        %994 = vmatprep.subr.mxu0 0.0
        %995 = vmatpush1.msra.mxu0 0.0
        %996 = vmatprep.subr.mxu0 0.0
        %997 = vmatpush1.msra.mxu0 0.0
        %998 = vmatprep.subr.mxu0 0.0
        %999 = vmatpush1.msra.mxu0 0.0
        %1000 = vmatprep.mubr.f32.mxu0 0.0
        %1001 = vmatmul.mubr.f32.gmra.mrb[0].mxu0 %v934
        %v1002 = vpop.f32.mrb[0].mxu0
        %v1003 = vadd.f32 0.0, %v1002
        %v1004 = vpop.f32.mrb[0].mxu0
        %v1005 = vadd.f32 0.0, %v1004
        %1006 = vdwg.mxu0
        %v1007 = vadd.f32 %v912, %v1003
        %v1008 = vadd.f32 %v913, %v1005
        %1009 = vrot.lane.b32.xlu0 %v256, 111
        %v1010 = vpop.permute.xlu0 %1009
        %1011 = vrot.lane.b32.xlu0 %v257, 111
        %v1012 = vpop.permute.xlu0 %1011
        %vm1013 = vcmp.lt.s32.totalorder %v263, 111
        %v1014 = vsel %vm1013, %v1010, %v1012
        %v1015 = vsel %vm1013, %v1012, %v1010
        %v1016 = vlaneseq
        %v1017 = vshrl.u32 %v1016, 7
        %v1018 = vsub.s32 0, %v1017
        %v1019 = vrot.slane %v252, %v1018
        %v1020 = vlaneseq
        %v1021 = vshrl.u32 %v1020, 7
        %v1022 = vsub.s32 0, %v1021
        %v1023 = vrot.slane %v253, %v1022
        %v1024 = vmul.f32 %v1014, %v1019
        %v1025 = vmul.f32 %v1015, %v1023
        %s1026 = scalar_lea.vmem %s1, 64
        %v1027 = vld [vmem:[%s1026] sm:$0xff]
        %v1029 = vsel %vm297, %v1027, 0
        %1031 = vmatprep.subr.mxu0 %v1025
        %1032 = vmatpush1.msra.mxu0 %v1024
        %1033 = vmatprep.subr.mxu0 0.0
        %1034 = vmatpush1.msra.mxu0 0.0
        %1035 = vmatprep.subr.mxu0 0.0
        %1036 = vmatpush1.msra.mxu0 0.0
        %1037 = vmatprep.subr.mxu0 0.0
        %1038 = vmatpush1.msra.mxu0 0.0
        %1039 = vmatprep.subr.mxu0 0.0
        %1040 = vmatpush1.msra.mxu0 0.0
        %1041 = vmatprep.subr.mxu0 0.0
        %1042 = vmatpush1.msra.mxu0 0.0
        %1043 = vmatprep.subr.mxu0 0.0
        %1044 = vmatpush1.msra.mxu0 0.0
        %1045 = vmatprep.subr.mxu0 0.0
        %1046 = vmatpush1.msra.mxu0 0.0
        %1047 = vmatprep.subr.mxu0 0.0
        %1048 = vmatpush1.msra.mxu0 0.0
        %1049 = vmatprep.subr.mxu0 0.0
        %1050 = vmatpush1.msra.mxu0 0.0
        %1051 = vmatprep.subr.mxu0 0.0
        %1052 = vmatpush1.msra.mxu0 0.0
        %1053 = vmatprep.subr.mxu0 0.0
        %1054 = vmatpush1.msra.mxu0 0.0
        %1055 = vmatprep.subr.mxu0 0.0
        %1056 = vmatpush1.msra.mxu0 0.0
        %1057 = vmatprep.subr.mxu0 0.0
        %1058 = vmatpush1.msra.mxu0 0.0
        %1059 = vmatprep.subr.mxu0 0.0
        %1060 = vmatpush1.msra.mxu0 0.0
        %1061 = vmatprep.subr.mxu0 0.0
        %1062 = vmatpush1.msra.mxu0 0.0
        %1063 = vmatprep.subr.mxu0 0.0
        %1064 = vmatpush1.msra.mxu0 0.0
        %1065 = vmatprep.subr.mxu0 0.0
        %1066 = vmatpush1.msra.mxu0 0.0
        %1067 = vmatprep.subr.mxu0 0.0
        %1068 = vmatpush1.msra.mxu0 0.0
        %1069 = vmatprep.subr.mxu0 0.0
        %1070 = vmatpush1.msra.mxu0 0.0
        %1071 = vmatprep.subr.mxu0 0.0
        %1072 = vmatpush1.msra.mxu0 0.0
        %1073 = vmatprep.subr.mxu0 0.0
        %1074 = vmatpush1.msra.mxu0 0.0
        %1075 = vmatprep.subr.mxu0 0.0
        %1076 = vmatpush1.msra.mxu0 0.0
        %1077 = vmatprep.subr.mxu0 0.0
        %1078 = vmatpush1.msra.mxu0 0.0
        %1079 = vmatprep.subr.mxu0 0.0
        %1080 = vmatpush1.msra.mxu0 0.0
        %1081 = vmatprep.subr.mxu0 0.0
        %1082 = vmatpush1.msra.mxu0 0.0
        %1083 = vmatprep.subr.mxu0 0.0
        %1084 = vmatpush1.msra.mxu0 0.0
        %1085 = vmatprep.subr.mxu0 0.0
        %1086 = vmatpush1.msra.mxu0 0.0
        %1087 = vmatprep.subr.mxu0 0.0
        %1088 = vmatpush1.msra.mxu0 0.0
        %1089 = vmatprep.subr.mxu0 0.0
        %1090 = vmatpush1.msra.mxu0 0.0
        %1091 = vmatprep.subr.mxu0 0.0
        %1092 = vmatpush1.msra.mxu0 0.0
        %1093 = vmatprep.subr.mxu0 0.0
        %1094 = vmatpush1.msra.mxu0 0.0
        %1095 = vmatprep.mubr.f32.mxu0 0.0
        %1096 = vmatmul.mubr.f32.gmra.mrb[0].mxu0 %v1029
        %v1097 = vpop.f32.mrb[0].mxu0
        %v1098 = vadd.f32 0.0, %v1097
        %v1099 = vpop.f32.mrb[0].mxu0
        %v1100 = vadd.f32 0.0, %v1099
        %1101 = vdwg.mxu0
        %v1102 = vadd.f32 %v1007, %v1098
        %v1103 = vadd.f32 %v1008, %v1100
        %1105 = vset.pattern.permute.xlu0 0
        %1106 = vperm.xlu0 %1105, %v254
        %v1107 = vpop.permute.xlu0 %1106
        %v1109 = vadd.f32 %v1102, %v1107
        %v1110 = vadd.f32 %v1103, %v1107
        %1111 = vrot.lane.b32.xlu0 %v1109, 17
        %v1112 = vpop.permute.xlu0 %1111
        %1113 = vrot.lane.b32.xlu0 %v1110, 17
        %v1114 = vpop.permute.xlu0 %1113
        %v1115 = vsel %vm264, %v1112, %v1114
        %v1116 = vsel %vm264, %v1114, %v1112
        %v1117 = vmul.f32 %v1116, %v270
        %v1118 = vmul.f32 %v1115, %v274
        %v1119 = vld [vmem:[%s3] sm:$0xff]
        %1120 = vrot.lane.b32.xlu0 %v1109, 16
        %v1121 = vpop.permute.xlu0 %1120
        %1122 = vrot.lane.b32.xlu0 %v1110, 16
        %v1123 = vpop.permute.xlu0 %1122
        %v1124 = vsel %vm282, %v1121, %v1123
        %v1125 = vsel %vm282, %v1123, %v1121
        %v1126 = vmul.f32 %v1125, %v288
        %v1127 = vmul.f32 %v1124, %v292
        %s1128 = scalar_lea.vmem %s3, 8
        %v1129 = vld [vmem:[%s1128] sm:$0xff]
        %v1131 = vsel %vm297, %v1129, 0
        %1133 = vmatprep.subr.mxu0 %v1127
        %1134 = vmatpush1.msra.mxu0 %v1126
        %1135 = vmatprep.subr.mxu0 0.0
        %1136 = vmatpush1.msra.mxu0 0.0
        %1137 = vmatprep.subr.mxu0 0.0
        %1138 = vmatpush1.msra.mxu0 0.0
        %1139 = vmatprep.subr.mxu0 0.0
        %1140 = vmatpush1.msra.mxu0 0.0
        %1141 = vmatprep.subr.mxu0 0.0
        %1142 = vmatpush1.msra.mxu0 0.0
        %1143 = vmatprep.subr.mxu0 0.0
        %1144 = vmatpush1.msra.mxu0 0.0
        %1145 = vmatprep.subr.mxu0 0.0
        %1146 = vmatpush1.msra.mxu0 0.0
        %1147 = vmatprep.subr.mxu0 0.0
        %1148 = vmatpush1.msra.mxu0 0.0
        %1149 = vmatprep.subr.mxu0 0.0
        %1150 = vmatpush1.msra.mxu0 0.0
        %1151 = vmatprep.subr.mxu0 0.0
        %1152 = vmatpush1.msra.mxu0 0.0
        %1153 = vmatprep.subr.mxu0 0.0
        %1154 = vmatpush1.msra.mxu0 0.0
        %1155 = vmatprep.subr.mxu0 0.0
        %1156 = vmatpush1.msra.mxu0 0.0
        %1157 = vmatprep.subr.mxu0 0.0
        %1158 = vmatpush1.msra.mxu0 0.0
        %1159 = vmatprep.subr.mxu0 0.0
        %1160 = vmatpush1.msra.mxu0 0.0
        %1161 = vmatprep.subr.mxu0 0.0
        %1162 = vmatpush1.msra.mxu0 0.0
        %1163 = vmatprep.subr.mxu0 0.0
        %1164 = vmatpush1.msra.mxu0 0.0
        %1165 = vmatprep.subr.mxu0 0.0
        %1166 = vmatpush1.msra.mxu0 0.0
        %1167 = vmatprep.subr.mxu0 0.0
        %1168 = vmatpush1.msra.mxu0 0.0
        %1169 = vmatprep.subr.mxu0 0.0
        %1170 = vmatpush1.msra.mxu0 0.0
        %1171 = vmatprep.subr.mxu0 0.0
        %1172 = vmatpush1.msra.mxu0 0.0
        %1173 = vmatprep.subr.mxu0 0.0
        %1174 = vmatpush1.msra.mxu0 0.0
        %1175 = vmatprep.subr.mxu0 0.0
        %1176 = vmatpush1.msra.mxu0 0.0
        %1177 = vmatprep.subr.mxu0 0.0
        %1178 = vmatpush1.msra.mxu0 0.0
        %1179 = vmatprep.subr.mxu0 0.0
        %1180 = vmatpush1.msra.mxu0 0.0
        %1181 = vmatprep.subr.mxu0 0.0
        %1182 = vmatpush1.msra.mxu0 0.0
        %1183 = vmatprep.subr.mxu0 0.0
        %1184 = vmatpush1.msra.mxu0 0.0
        %1185 = vmatprep.subr.mxu0 0.0
        %1186 = vmatpush1.msra.mxu0 0.0
        %1187 = vmatprep.subr.mxu0 0.0
        %1188 = vmatpush1.msra.mxu0 0.0
        %1189 = vmatprep.subr.mxu0 0.0
        %1190 = vmatpush1.msra.mxu0 0.0
        %1191 = vmatprep.subr.mxu0 0.0
        %1192 = vmatpush1.msra.mxu0 0.0
        %1193 = vmatprep.subr.mxu0 0.0
        %1194 = vmatpush1.msra.mxu0 0.0
        %1195 = vmatprep.subr.mxu0 0.0
        %1196 = vmatpush1.msra.mxu0 0.0
        %1197 = vmatprep.mubr.f32.mxu0 0.0
        %1198 = vmatmul.mubr.f32.gmra.mrb[0].mxu0 %v1131
        %v1199 = vpop.f32.mrb[0].mxu0
        %v1200 = vadd.f32 0.0, %v1199
        %v1201 = vpop.f32.mrb[0].mxu0
        %v1202 = vadd.f32 0.0, %v1201
        %1203 = vdwg.mxu0
        %v1205 = vsel %vm297, %v1119, 0
        %1207 = vmatprep.subr.mxu0 %v1118
        %1208 = vmatpush1.msra.mxu0 %v1117
        %1209 = vmatprep.subr.mxu0 0.0
        %1210 = vmatpush1.msra.mxu0 0.0
        %1211 = vmatprep.subr.mxu0 0.0
        %1212 = vmatpush1.msra.mxu0 0.0
        %1213 = vmatprep.subr.mxu0 0.0
        %1214 = vmatpush1.msra.mxu0 0.0
        %1215 = vmatprep.subr.mxu0 0.0
        %1216 = vmatpush1.msra.mxu0 0.0
        %1217 = vmatprep.subr.mxu0 0.0
        %1218 = vmatpush1.msra.mxu0 0.0
        %1219 = vmatprep.subr.mxu0 0.0
        %1220 = vmatpush1.msra.mxu0 0.0
        %1221 = vmatprep.subr.mxu0 0.0
        %1222 = vmatpush1.msra.mxu0 0.0
        %1223 = vmatprep.subr.mxu0 0.0
        %1224 = vmatpush1.msra.mxu0 0.0
        %1225 = vmatprep.subr.mxu0 0.0
        %1226 = vmatpush1.msra.mxu0 0.0
        %1227 = vmatprep.subr.mxu0 0.0
        %1228 = vmatpush1.msra.mxu0 0.0
        %1229 = vmatprep.subr.mxu0 0.0
        %1230 = vmatpush1.msra.mxu0 0.0
        %1231 = vmatprep.subr.mxu0 0.0
        %1232 = vmatpush1.msra.mxu0 0.0
        %1233 = vmatprep.subr.mxu0 0.0
        %1234 = vmatpush1.msra.mxu0 0.0
        %1235 = vmatprep.subr.mxu0 0.0
        %1236 = vmatpush1.msra.mxu0 0.0
        %1237 = vmatprep.subr.mxu0 0.0
        %1238 = vmatpush1.msra.mxu0 0.0
        %1239 = vmatprep.subr.mxu0 0.0
        %1240 = vmatpush1.msra.mxu0 0.0
        %1241 = vmatprep.subr.mxu0 0.0
        %1242 = vmatpush1.msra.mxu0 0.0
        %1243 = vmatprep.subr.mxu0 0.0
        %1244 = vmatpush1.msra.mxu0 0.0
        %1245 = vmatprep.subr.mxu0 0.0
        %1246 = vmatpush1.msra.mxu0 0.0
        %1247 = vmatprep.subr.mxu0 0.0
        %1248 = vmatpush1.msra.mxu0 0.0
        %1249 = vmatprep.subr.mxu0 0.0
        %1250 = vmatpush1.msra.mxu0 0.0
        %1251 = vmatprep.subr.mxu0 0.0
        %1252 = vmatpush1.msra.mxu0 0.0
        %1253 = vmatprep.subr.mxu0 0.0
        %1254 = vmatpush1.msra.mxu0 0.0
        %1255 = vmatprep.subr.mxu0 0.0
        %1256 = vmatpush1.msra.mxu0 0.0
        %1257 = vmatprep.subr.mxu0 0.0
        %1258 = vmatpush1.msra.mxu0 0.0
        %1259 = vmatprep.subr.mxu0 0.0
        %1260 = vmatpush1.msra.mxu0 0.0
        %1261 = vmatprep.subr.mxu0 0.0
        %1262 = vmatpush1.msra.mxu0 0.0
        %1263 = vmatprep.subr.mxu0 0.0
        %1264 = vmatpush1.msra.mxu0 0.0
        %1265 = vmatprep.subr.mxu0 0.0
        %1266 = vmatpush1.msra.mxu0 0.0
        %1267 = vmatprep.subr.mxu0 0.0
        %1268 = vmatpush1.msra.mxu0 0.0
        %1269 = vmatprep.subr.mxu0 0.0
        %1270 = vmatpush1.msra.mxu0 0.0
        %1271 = vmatprep.mubr.f32.mxu0 0.0
        %1272 = vmatmul.mubr.f32.gmra.mrb[0].mxu0 %v1205
        %v1273 = vpop.f32.mrb[0].mxu0
        %v1274 = vadd.f32 %v1200, %v1273
        %v1275 = vpop.f32.mrb[0].mxu0
        %v1276 = vadd.f32 %v1202, %v1275
        %1277 = vdwg.mxu0
        %1278 = vrot.lane.b32.xlu0 %v1109, 15
        %v1279 = vpop.permute.xlu0 %1278
        %1280 = vrot.lane.b32.xlu0 %v1110, 15
        %v1281 = vpop.permute.xlu0 %1280
        %v1282 = vsel %vm450, %v1279, %v1281
        %v1283 = vsel %vm450, %v1281, %v1279
        %v1284 = vmul.f32 %v1283, %v456
        %v1285 = vmul.f32 %v1282, %v460
        %s1286 = scalar_lea.vmem %s3, 16
        %v1287 = vld [vmem:[%s1286] sm:$0xff]
        %v1289 = vsel %vm297, %v1287, 0
        %1291 = vmatprep.subr.mxu0 %v1285
        %1292 = vmatpush1.msra.mxu0 %v1284
        %1293 = vmatprep.subr.mxu0 0.0
        %1294 = vmatpush1.msra.mxu0 0.0
        %1295 = vmatprep.subr.mxu0 0.0
        %1296 = vmatpush1.msra.mxu0 0.0
        %1297 = vmatprep.subr.mxu0 0.0
        %1298 = vmatpush1.msra.mxu0 0.0
        %1299 = vmatprep.subr.mxu0 0.0
        %1300 = vmatpush1.msra.mxu0 0.0
        %1301 = vmatprep.subr.mxu0 0.0
        %1302 = vmatpush1.msra.mxu0 0.0
        %1303 = vmatprep.subr.mxu0 0.0
        %1304 = vmatpush1.msra.mxu0 0.0
        %1305 = vmatprep.subr.mxu0 0.0
        %1306 = vmatpush1.msra.mxu0 0.0
        %1307 = vmatprep.subr.mxu0 0.0
        %1308 = vmatpush1.msra.mxu0 0.0
        %1309 = vmatprep.subr.mxu0 0.0
        %1310 = vmatpush1.msra.mxu0 0.0
        %1311 = vmatprep.subr.mxu0 0.0
        %1312 = vmatpush1.msra.mxu0 0.0
        %1313 = vmatprep.subr.mxu0 0.0
        %1314 = vmatpush1.msra.mxu0 0.0
        %1315 = vmatprep.subr.mxu0 0.0
        %1316 = vmatpush1.msra.mxu0 0.0
        %1317 = vmatprep.subr.mxu0 0.0
        %1318 = vmatpush1.msra.mxu0 0.0
        %1319 = vmatprep.subr.mxu0 0.0
        %1320 = vmatpush1.msra.mxu0 0.0
        %1321 = vmatprep.subr.mxu0 0.0
        %1322 = vmatpush1.msra.mxu0 0.0
        %1323 = vmatprep.subr.mxu0 0.0
        %1324 = vmatpush1.msra.mxu0 0.0
        %1325 = vmatprep.subr.mxu0 0.0
        %1326 = vmatpush1.msra.mxu0 0.0
        %1327 = vmatprep.subr.mxu0 0.0
        %1328 = vmatpush1.msra.mxu0 0.0
        %1329 = vmatprep.subr.mxu0 0.0
        %1330 = vmatpush1.msra.mxu0 0.0
        %1331 = vmatprep.subr.mxu0 0.0
        %1332 = vmatpush1.msra.mxu0 0.0
        %1333 = vmatprep.subr.mxu0 0.0
        %1334 = vmatpush1.msra.mxu0 0.0
        %1335 = vmatprep.subr.mxu0 0.0
        %1336 = vmatpush1.msra.mxu0 0.0
        %1337 = vmatprep.subr.mxu0 0.0
        %1338 = vmatpush1.msra.mxu0 0.0
        %1339 = vmatprep.subr.mxu0 0.0
        %1340 = vmatpush1.msra.mxu0 0.0
        %1341 = vmatprep.subr.mxu0 0.0
        %1342 = vmatpush1.msra.mxu0 0.0
        %1343 = vmatprep.subr.mxu0 0.0
        %1344 = vmatpush1.msra.mxu0 0.0
        %1345 = vmatprep.subr.mxu0 0.0
        %1346 = vmatpush1.msra.mxu0 0.0
        %1347 = vmatprep.subr.mxu0 0.0
        %1348 = vmatpush1.msra.mxu0 0.0
        %1349 = vmatprep.subr.mxu0 0.0
        %1350 = vmatpush1.msra.mxu0 0.0
        %1351 = vmatprep.subr.mxu0 0.0
        %1352 = vmatpush1.msra.mxu0 0.0
        %1353 = vmatprep.subr.mxu0 0.0
        %1354 = vmatpush1.msra.mxu0 0.0
        %1355 = vmatprep.mubr.f32.mxu0 0.0
        %1356 = vmatmul.mubr.f32.gmra.mrb[0].mxu0 %v1289
        %v1357 = vpop.f32.mrb[0].mxu0
        %v1358 = vadd.f32 0.0, %v1357
        %v1359 = vpop.f32.mrb[0].mxu0
        %v1360 = vadd.f32 0.0, %v1359
        %1361 = vdwg.mxu0
        %v1362 = vadd.f32 %v1274, %v1358
        %v1363 = vadd.f32 %v1276, %v1360
        %1364 = vrot.lane.b32.xlu0 %v1109, 1
        %v1365 = vpop.permute.xlu0 %1364
        %1366 = vrot.lane.b32.xlu0 %v1110, 1
        %v1367 = vpop.permute.xlu0 %1366
        %v1368 = vsel %vm545, %v1365, %v1367
        %v1369 = vsel %vm545, %v1367, %v1365
        %v1370 = vmul.f32 %v1369, %v551
        %v1371 = vmul.f32 %v1368, %v555
        %s1372 = scalar_lea.vmem %s3, 24
        %v1373 = vld [vmem:[%s1372] sm:$0xff]
        %v1375 = vsel %vm297, %v1373, 0
        %1377 = vmatprep.subr.mxu0 %v1371
        %1378 = vmatpush1.msra.mxu0 %v1370
        %1379 = vmatprep.subr.mxu0 0.0
        %1380 = vmatpush1.msra.mxu0 0.0
        %1381 = vmatprep.subr.mxu0 0.0
        %1382 = vmatpush1.msra.mxu0 0.0
        %1383 = vmatprep.subr.mxu0 0.0
        %1384 = vmatpush1.msra.mxu0 0.0
        %1385 = vmatprep.subr.mxu0 0.0
        %1386 = vmatpush1.msra.mxu0 0.0
        %1387 = vmatprep.subr.mxu0 0.0
        %1388 = vmatpush1.msra.mxu0 0.0
        %1389 = vmatprep.subr.mxu0 0.0
        %1390 = vmatpush1.msra.mxu0 0.0
        %1391 = vmatprep.subr.mxu0 0.0
        %1392 = vmatpush1.msra.mxu0 0.0
        %1393 = vmatprep.subr.mxu0 0.0
        %1394 = vmatpush1.msra.mxu0 0.0
        %1395 = vmatprep.subr.mxu0 0.0
        %1396 = vmatpush1.msra.mxu0 0.0
        %1397 = vmatprep.subr.mxu0 0.0
        %1398 = vmatpush1.msra.mxu0 0.0
        %1399 = vmatprep.subr.mxu0 0.0
        %1400 = vmatpush1.msra.mxu0 0.0
        %1401 = vmatprep.subr.mxu0 0.0
        %1402 = vmatpush1.msra.mxu0 0.0
        %1403 = vmatprep.subr.mxu0 0.0
        %1404 = vmatpush1.msra.mxu0 0.0
        %1405 = vmatprep.subr.mxu0 0.0
        %1406 = vmatpush1.msra.mxu0 0.0
        %1407 = vmatprep.subr.mxu0 0.0
        %1408 = vmatpush1.msra.mxu0 0.0
        %1409 = vmatprep.subr.mxu0 0.0
        %1410 = vmatpush1.msra.mxu0 0.0
        %1411 = vmatprep.subr.mxu0 0.0
        %1412 = vmatpush1.msra.mxu0 0.0
        %1413 = vmatprep.subr.mxu0 0.0
        %1414 = vmatpush1.msra.mxu0 0.0
        %1415 = vmatprep.subr.mxu0 0.0
        %1416 = vmatpush1.msra.mxu0 0.0
        %1417 = vmatprep.subr.mxu0 0.0
        %1418 = vmatpush1.msra.mxu0 0.0
        %1419 = vmatprep.subr.mxu0 0.0
        %1420 = vmatpush1.msra.mxu0 0.0
        %1421 = vmatprep.subr.mxu0 0.0
        %1422 = vmatpush1.msra.mxu0 0.0
        %1423 = vmatprep.subr.mxu0 0.0
        %1424 = vmatpush1.msra.mxu0 0.0
        %1425 = vmatprep.subr.mxu0 0.0
        %1426 = vmatpush1.msra.mxu0 0.0
        %1427 = vmatprep.subr.mxu0 0.0
        %1428 = vmatpush1.msra.mxu0 0.0
        %1429 = vmatprep.subr.mxu0 0.0
        %1430 = vmatpush1.msra.mxu0 0.0
        %1431 = vmatprep.subr.mxu0 0.0
        %1432 = vmatpush1.msra.mxu0 0.0
        %1433 = vmatprep.subr.mxu0 0.0
        %1434 = vmatpush1.msra.mxu0 0.0
        %1435 = vmatprep.subr.mxu0 0.0
        %1436 = vmatpush1.msra.mxu0 0.0
        %1437 = vmatprep.subr.mxu0 0.0
        %1438 = vmatpush1.msra.mxu0 0.0
        %1439 = vmatprep.subr.mxu0 0.0
        %1440 = vmatpush1.msra.mxu0 0.0
        %1441 = vmatprep.mubr.f32.mxu0 0.0
        %1442 = vmatmul.mubr.f32.gmra.mrb[0].mxu0 %v1375
        %v1443 = vpop.f32.mrb[0].mxu0
        %v1444 = vadd.f32 0.0, %v1443
        %v1445 = vpop.f32.mrb[0].mxu0
        %v1446 = vadd.f32 0.0, %v1445
        %1447 = vdwg.mxu0
        %v1448 = vadd.f32 %v1362, %v1444
        %v1449 = vadd.f32 %v1363, %v1446
        %v1450 = vmul.f32 %v1109, %v639
        %v1451 = vmul.f32 %v1110, %v643
        %s1452 = scalar_lea.vmem %s3, 32
        %v1453 = vld [vmem:[%s1452] sm:$0xff]
        %v1455 = vsel %vm297, %v1453, 0
        %1457 = vmatprep.subr.mxu0 %v1451
        %1458 = vmatpush1.msra.mxu0 %v1450
        %1459 = vmatprep.subr.mxu0 0.0
        %1460 = vmatpush1.msra.mxu0 0.0
        %1461 = vmatprep.subr.mxu0 0.0
        %1462 = vmatpush1.msra.mxu0 0.0
        %1463 = vmatprep.subr.mxu0 0.0
        %1464 = vmatpush1.msra.mxu0 0.0
        %1465 = vmatprep.subr.mxu0 0.0
        %1466 = vmatpush1.msra.mxu0 0.0
        %1467 = vmatprep.subr.mxu0 0.0
        %1468 = vmatpush1.msra.mxu0 0.0
        %1469 = vmatprep.subr.mxu0 0.0
        %1470 = vmatpush1.msra.mxu0 0.0
        %1471 = vmatprep.subr.mxu0 0.0
        %1472 = vmatpush1.msra.mxu0 0.0
        %1473 = vmatprep.subr.mxu0 0.0
        %1474 = vmatpush1.msra.mxu0 0.0
        %1475 = vmatprep.subr.mxu0 0.0
        %1476 = vmatpush1.msra.mxu0 0.0
        %1477 = vmatprep.subr.mxu0 0.0
        %1478 = vmatpush1.msra.mxu0 0.0
        %1479 = vmatprep.subr.mxu0 0.0
        %1480 = vmatpush1.msra.mxu0 0.0
        %1481 = vmatprep.subr.mxu0 0.0
        %1482 = vmatpush1.msra.mxu0 0.0
        %1483 = vmatprep.subr.mxu0 0.0
        %1484 = vmatpush1.msra.mxu0 0.0
        %1485 = vmatprep.subr.mxu0 0.0
        %1486 = vmatpush1.msra.mxu0 0.0
        %1487 = vmatprep.subr.mxu0 0.0
        %1488 = vmatpush1.msra.mxu0 0.0
        %1489 = vmatprep.subr.mxu0 0.0
        %1490 = vmatpush1.msra.mxu0 0.0
        %1491 = vmatprep.subr.mxu0 0.0
        %1492 = vmatpush1.msra.mxu0 0.0
        %1493 = vmatprep.subr.mxu0 0.0
        %1494 = vmatpush1.msra.mxu0 0.0
        %1495 = vmatprep.subr.mxu0 0.0
        %1496 = vmatpush1.msra.mxu0 0.0
        %1497 = vmatprep.subr.mxu0 0.0
        %1498 = vmatpush1.msra.mxu0 0.0
        %1499 = vmatprep.subr.mxu0 0.0
        %1500 = vmatpush1.msra.mxu0 0.0
        %1501 = vmatprep.subr.mxu0 0.0
        %1502 = vmatpush1.msra.mxu0 0.0
        %1503 = vmatprep.subr.mxu0 0.0
        %1504 = vmatpush1.msra.mxu0 0.0
        %1505 = vmatprep.subr.mxu0 0.0
        %1506 = vmatpush1.msra.mxu0 0.0
        %1507 = vmatprep.subr.mxu0 0.0
        %1508 = vmatpush1.msra.mxu0 0.0
        %1509 = vmatprep.subr.mxu0 0.0
        %1510 = vmatpush1.msra.mxu0 0.0
        %1511 = vmatprep.subr.mxu0 0.0
        %1512 = vmatpush1.msra.mxu0 0.0
        %1513 = vmatprep.subr.mxu0 0.0
        %1514 = vmatpush1.msra.mxu0 0.0
        %1515 = vmatprep.subr.mxu0 0.0
        %1516 = vmatpush1.msra.mxu0 0.0
        %1517 = vmatprep.subr.mxu0 0.0
        %1518 = vmatpush1.msra.mxu0 0.0
        %1519 = vmatprep.subr.mxu0 0.0
        %1520 = vmatpush1.msra.mxu0 0.0
        %1521 = vmatprep.mubr.f32.mxu0 0.0
        %1522 = vmatmul.mubr.f32.gmra.mrb[0].mxu0 %v1455
        %v1523 = vpop.f32.mrb[0].mxu0
        %v1524 = vadd.f32 0.0, %v1523
        %v1525 = vpop.f32.mrb[0].mxu0
        %v1526 = vadd.f32 0.0, %v1525
        %1527 = vdwg.mxu0
        %v1528 = vadd.f32 %v1448, %v1524
        %v1529 = vadd.f32 %v1449, %v1526
        %1530 = vrot.lane.b32.xlu0 %v1109, 127
        %v1531 = vpop.permute.xlu0 %1530
        %1532 = vrot.lane.b32.xlu0 %v1110, 127
        %v1533 = vpop.permute.xlu0 %1532
        %v1534 = vsel %vm728, %v1531, %v1533
        %v1535 = vsel %vm728, %v1533, %v1531
        %v1536 = vmul.f32 %v1534, %v734
        %v1537 = vmul.f32 %v1535, %v738
        %s1538 = scalar_lea.vmem %s3, 40
        %v1539 = vld [vmem:[%s1538] sm:$0xff]
        %v1541 = vsel %vm297, %v1539, 0
        %1543 = vmatprep.subr.mxu0 %v1537
        %1544 = vmatpush1.msra.mxu0 %v1536
        %1545 = vmatprep.subr.mxu0 0.0
        %1546 = vmatpush1.msra.mxu0 0.0
        %1547 = vmatprep.subr.mxu0 0.0
        %1548 = vmatpush1.msra.mxu0 0.0
        %1549 = vmatprep.subr.mxu0 0.0
        %1550 = vmatpush1.msra.mxu0 0.0
        %1551 = vmatprep.subr.mxu0 0.0
        %1552 = vmatpush1.msra.mxu0 0.0
        %1553 = vmatprep.subr.mxu0 0.0
        %1554 = vmatpush1.msra.mxu0 0.0
        %1555 = vmatprep.subr.mxu0 0.0
        %1556 = vmatpush1.msra.mxu0 0.0
        %1557 = vmatprep.subr.mxu0 0.0
        %1558 = vmatpush1.msra.mxu0 0.0
        %1559 = vmatprep.subr.mxu0 0.0
        %1560 = vmatpush1.msra.mxu0 0.0
        %1561 = vmatprep.subr.mxu0 0.0
        %1562 = vmatpush1.msra.mxu0 0.0
        %1563 = vmatprep.subr.mxu0 0.0
        %1564 = vmatpush1.msra.mxu0 0.0
        %1565 = vmatprep.subr.mxu0 0.0
        %1566 = vmatpush1.msra.mxu0 0.0
        %1567 = vmatprep.subr.mxu0 0.0
        %1568 = vmatpush1.msra.mxu0 0.0
        %1569 = vmatprep.subr.mxu0 0.0
        %1570 = vmatpush1.msra.mxu0 0.0
        %1571 = vmatprep.subr.mxu0 0.0
        %1572 = vmatpush1.msra.mxu0 0.0
        %1573 = vmatprep.subr.mxu0 0.0
        %1574 = vmatpush1.msra.mxu0 0.0
        %1575 = vmatprep.subr.mxu0 0.0
        %1576 = vmatpush1.msra.mxu0 0.0
        %1577 = vmatprep.subr.mxu0 0.0
        %1578 = vmatpush1.msra.mxu0 0.0
        %1579 = vmatprep.subr.mxu0 0.0
        %1580 = vmatpush1.msra.mxu0 0.0
        %1581 = vmatprep.subr.mxu0 0.0
        %1582 = vmatpush1.msra.mxu0 0.0
        %1583 = vmatprep.subr.mxu0 0.0
        %1584 = vmatpush1.msra.mxu0 0.0
        %1585 = vmatprep.subr.mxu0 0.0
        %1586 = vmatpush1.msra.mxu0 0.0
        %1587 = vmatprep.subr.mxu0 0.0
        %1588 = vmatpush1.msra.mxu0 0.0
        %1589 = vmatprep.subr.mxu0 0.0
        %1590 = vmatpush1.msra.mxu0 0.0
        %1591 = vmatprep.subr.mxu0 0.0
        %1592 = vmatpush1.msra.mxu0 0.0
        %1593 = vmatprep.subr.mxu0 0.0
        %1594 = vmatpush1.msra.mxu0 0.0
        %1595 = vmatprep.subr.mxu0 0.0
        %1596 = vmatpush1.msra.mxu0 0.0
        %1597 = vmatprep.subr.mxu0 0.0
        %1598 = vmatpush1.msra.mxu0 0.0
        %1599 = vmatprep.subr.mxu0 0.0
        %1600 = vmatpush1.msra.mxu0 0.0
        %1601 = vmatprep.subr.mxu0 0.0
        %1602 = vmatpush1.msra.mxu0 0.0
        %1603 = vmatprep.subr.mxu0 0.0
        %1604 = vmatpush1.msra.mxu0 0.0
        %1605 = vmatprep.subr.mxu0 0.0
        %1606 = vmatpush1.msra.mxu0 0.0
        %1607 = vmatprep.mubr.f32.mxu0 0.0
        %1608 = vmatmul.mubr.f32.gmra.mrb[0].mxu0 %v1541
        %v1609 = vpop.f32.mrb[0].mxu0
        %v1610 = vadd.f32 0.0, %v1609
        %v1611 = vpop.f32.mrb[0].mxu0
        %v1612 = vadd.f32 0.0, %v1611
        %1613 = vdwg.mxu0
        %v1614 = vadd.f32 %v1528, %v1610
        %v1615 = vadd.f32 %v1529, %v1612
        %1616 = vrot.lane.b32.xlu0 %v1109, 113
        %v1617 = vpop.permute.xlu0 %1616
        %1618 = vrot.lane.b32.xlu0 %v1110, 113
        %v1619 = vpop.permute.xlu0 %1618
        %v1620 = vsel %vm823, %v1617, %v1619
        %v1621 = vsel %vm823, %v1619, %v1617
        %v1622 = vmul.f32 %v1620, %v829
        %v1623 = vmul.f32 %v1621, %v833
        %s1624 = scalar_lea.vmem %s3, 48
        %v1625 = vld [vmem:[%s1624] sm:$0xff]
        %v1627 = vsel %vm297, %v1625, 0
        %1629 = vmatprep.subr.mxu0 %v1623
        %1630 = vmatpush1.msra.mxu0 %v1622
        %1631 = vmatprep.subr.mxu0 0.0
        %1632 = vmatpush1.msra.mxu0 0.0
        %1633 = vmatprep.subr.mxu0 0.0
        %1634 = vmatpush1.msra.mxu0 0.0
        %1635 = vmatprep.subr.mxu0 0.0
        %1636 = vmatpush1.msra.mxu0 0.0
        %1637 = vmatprep.subr.mxu0 0.0
        %1638 = vmatpush1.msra.mxu0 0.0
        %1639 = vmatprep.subr.mxu0 0.0
        %1640 = vmatpush1.msra.mxu0 0.0
        %1641 = vmatprep.subr.mxu0 0.0
        %1642 = vmatpush1.msra.mxu0 0.0
        %1643 = vmatprep.subr.mxu0 0.0
        %1644 = vmatpush1.msra.mxu0 0.0
        %1645 = vmatprep.subr.mxu0 0.0
        %1646 = vmatpush1.msra.mxu0 0.0
        %1647 = vmatprep.subr.mxu0 0.0
        %1648 = vmatpush1.msra.mxu0 0.0
        %1649 = vmatprep.subr.mxu0 0.0
        %1650 = vmatpush1.msra.mxu0 0.0
        %1651 = vmatprep.subr.mxu0 0.0
        %1652 = vmatpush1.msra.mxu0 0.0
        %1653 = vmatprep.subr.mxu0 0.0
        %1654 = vmatpush1.msra.mxu0 0.0
        %1655 = vmatprep.subr.mxu0 0.0
        %1656 = vmatpush1.msra.mxu0 0.0
        %1657 = vmatprep.subr.mxu0 0.0
        %1658 = vmatpush1.msra.mxu0 0.0
        %1659 = vmatprep.subr.mxu0 0.0
        %1660 = vmatpush1.msra.mxu0 0.0
        %1661 = vmatprep.subr.mxu0 0.0
        %1662 = vmatpush1.msra.mxu0 0.0
        %1663 = vmatprep.subr.mxu0 0.0
        %1664 = vmatpush1.msra.mxu0 0.0
        %1665 = vmatprep.subr.mxu0 0.0
        %1666 = vmatpush1.msra.mxu0 0.0
        %1667 = vmatprep.subr.mxu0 0.0
        %1668 = vmatpush1.msra.mxu0 0.0
        %1669 = vmatprep.subr.mxu0 0.0
        %1670 = vmatpush1.msra.mxu0 0.0
        %1671 = vmatprep.subr.mxu0 0.0
        %1672 = vmatpush1.msra.mxu0 0.0
        %1673 = vmatprep.subr.mxu0 0.0
        %1674 = vmatpush1.msra.mxu0 0.0
        %1675 = vmatprep.subr.mxu0 0.0
        %1676 = vmatpush1.msra.mxu0 0.0
        %1677 = vmatprep.subr.mxu0 0.0
        %1678 = vmatpush1.msra.mxu0 0.0
        %1679 = vmatprep.subr.mxu0 0.0
        %1680 = vmatpush1.msra.mxu0 0.0
        %1681 = vmatprep.subr.mxu0 0.0
        %1682 = vmatpush1.msra.mxu0 0.0
        %1683 = vmatprep.subr.mxu0 0.0
        %1684 = vmatpush1.msra.mxu0 0.0
        %1685 = vmatprep.subr.mxu0 0.0
        %1686 = vmatpush1.msra.mxu0 0.0
        %1687 = vmatprep.subr.mxu0 0.0
        %1688 = vmatpush1.msra.mxu0 0.0
        %1689 = vmatprep.subr.mxu0 0.0
        %1690 = vmatpush1.msra.mxu0 0.0
        %1691 = vmatprep.subr.mxu0 0.0
        %1692 = vmatpush1.msra.mxu0 0.0
        %1693 = vmatprep.mubr.f32.mxu0 0.0
        %1694 = vmatmul.mubr.f32.gmra.mrb[0].mxu0 %v1627
        %v1695 = vpop.f32.mrb[0].mxu0
        %v1696 = vadd.f32 0.0, %v1695
        %v1697 = vpop.f32.mrb[0].mxu0
        %v1698 = vadd.f32 0.0, %v1697
        %1699 = vdwg.mxu0
        %v1700 = vadd.f32 %v1614, %v1696
        %v1701 = vadd.f32 %v1615, %v1698
        %1702 = vrot.lane.b32.xlu0 %v1109, 112
        %v1703 = vpop.permute.xlu0 %1702
        %1704 = vrot.lane.b32.xlu0 %v1110, 112
        %v1705 = vpop.permute.xlu0 %1704
        %v1706 = vsel %vm918, %v1703, %v1705
        %v1707 = vsel %vm918, %v1705, %v1703
        %v1708 = vmul.f32 %v1706, %v924
        %v1709 = vmul.f32 %v1707, %v928
        %s1710 = scalar_lea.vmem %s3, 56
        %v1711 = vld [vmem:[%s1710] sm:$0xff]
        %v1713 = vsel %vm297, %v1711, 0
        %1715 = vmatprep.subr.mxu0 %v1709
        %1716 = vmatpush1.msra.mxu0 %v1708
        %1717 = vmatprep.subr.mxu0 0.0
        %1718 = vmatpush1.msra.mxu0 0.0
        %1719 = vmatprep.subr.mxu0 0.0
        %1720 = vmatpush1.msra.mxu0 0.0
        %1721 = vmatprep.subr.mxu0 0.0
        %1722 = vmatpush1.msra.mxu0 0.0
        %1723 = vmatprep.subr.mxu0 0.0
        %1724 = vmatpush1.msra.mxu0 0.0
        %1725 = vmatprep.subr.mxu0 0.0
        %1726 = vmatpush1.msra.mxu0 0.0
        %1727 = vmatprep.subr.mxu0 0.0
        %1728 = vmatpush1.msra.mxu0 0.0
        %1729 = vmatprep.subr.mxu0 0.0
        %1730 = vmatpush1.msra.mxu0 0.0
        %1731 = vmatprep.subr.mxu0 0.0
        %1732 = vmatpush1.msra.mxu0 0.0
        %1733 = vmatprep.subr.mxu0 0.0
        %1734 = vmatpush1.msra.mxu0 0.0
        %1735 = vmatprep.subr.mxu0 0.0
        %1736 = vmatpush1.msra.mxu0 0.0
        %1737 = vmatprep.subr.mxu0 0.0
        %1738 = vmatpush1.msra.mxu0 0.0
        %1739 = vmatprep.subr.mxu0 0.0
        %1740 = vmatpush1.msra.mxu0 0.0
        %1741 = vmatprep.subr.mxu0 0.0
        %1742 = vmatpush1.msra.mxu0 0.0
        %1743 = vmatprep.subr.mxu0 0.0
        %1744 = vmatpush1.msra.mxu0 0.0
        %1745 = vmatprep.subr.mxu0 0.0
        %1746 = vmatpush1.msra.mxu0 0.0
        %1747 = vmatprep.subr.mxu0 0.0
        %1748 = vmatpush1.msra.mxu0 0.0
        %1749 = vmatprep.subr.mxu0 0.0
        %1750 = vmatpush1.msra.mxu0 0.0
        %1751 = vmatprep.subr.mxu0 0.0
        %1752 = vmatpush1.msra.mxu0 0.0
        %1753 = vmatprep.subr.mxu0 0.0
        %1754 = vmatpush1.msra.mxu0 0.0
        %1755 = vmatprep.subr.mxu0 0.0
        %1756 = vmatpush1.msra.mxu0 0.0
        %1757 = vmatprep.subr.mxu0 0.0
        %1758 = vmatpush1.msra.mxu0 0.0
        %1759 = vmatprep.subr.mxu0 0.0
        %1760 = vmatpush1.msra.mxu0 0.0
        %1761 = vmatprep.subr.mxu0 0.0
        %1762 = vmatpush1.msra.mxu0 0.0
        %1763 = vmatprep.subr.mxu0 0.0
        %1764 = vmatpush1.msra.mxu0 0.0
        %1765 = vmatprep.subr.mxu0 0.0
        %1766 = vmatpush1.msra.mxu0 0.0
        %1767 = vmatprep.subr.mxu0 0.0
        %1768 = vmatpush1.msra.mxu0 0.0
        %1769 = vmatprep.subr.mxu0 0.0
        %1770 = vmatpush1.msra.mxu0 0.0
        %1771 = vmatprep.subr.mxu0 0.0
        %1772 = vmatpush1.msra.mxu0 0.0
        %1773 = vmatprep.subr.mxu0 0.0
        %1774 = vmatpush1.msra.mxu0 0.0
        %1775 = vmatprep.subr.mxu0 0.0
        %1776 = vmatpush1.msra.mxu0 0.0
        %1777 = vmatprep.subr.mxu0 0.0
        %1778 = vmatpush1.msra.mxu0 0.0
        %1779 = vmatprep.mubr.f32.mxu0 0.0
        %1780 = vmatmul.mubr.f32.gmra.mrb[0].mxu0 %v1713
        %v1781 = vpop.f32.mrb[0].mxu0
        %v1782 = vadd.f32 0.0, %v1781
        %v1783 = vpop.f32.mrb[0].mxu0
        %v1784 = vadd.f32 0.0, %v1783
        %1785 = vdwg.mxu0
        %v1786 = vadd.f32 %v1700, %v1782
        %v1787 = vadd.f32 %v1701, %v1784
        %1788 = vrot.lane.b32.xlu0 %v1109, 111
        %v1789 = vpop.permute.xlu0 %1788
        %1790 = vrot.lane.b32.xlu0 %v1110, 111
        %v1791 = vpop.permute.xlu0 %1790
        %v1792 = vsel %vm1013, %v1789, %v1791
        %v1793 = vsel %vm1013, %v1791, %v1789
        %v1794 = vmul.f32 %v1792, %v1019
        %v1795 = vmul.f32 %v1793, %v1023
        %s1796 = scalar_lea.vmem %s3, 64
        %v1797 = vld [vmem:[%s1796] sm:$0xff]
        %v1799 = vsel %vm297, %v1797, 0
        %1801 = vmatprep.subr.mxu0 %v1795
        %1802 = vmatpush1.msra.mxu0 %v1794
        %1803 = vmatprep.subr.mxu0 0.0
        %1804 = vmatpush1.msra.mxu0 0.0
        %1805 = vmatprep.subr.mxu0 0.0
        %1806 = vmatpush1.msra.mxu0 0.0
        %1807 = vmatprep.subr.mxu0 0.0
        %1808 = vmatpush1.msra.mxu0 0.0
        %1809 = vmatprep.subr.mxu0 0.0
        %1810 = vmatpush1.msra.mxu0 0.0
        %1811 = vmatprep.subr.mxu0 0.0
        %1812 = vmatpush1.msra.mxu0 0.0
        %1813 = vmatprep.subr.mxu0 0.0
        %1814 = vmatpush1.msra.mxu0 0.0
        %1815 = vmatprep.subr.mxu0 0.0
        %1816 = vmatpush1.msra.mxu0 0.0
        %1817 = vmatprep.subr.mxu0 0.0
        %1818 = vmatpush1.msra.mxu0 0.0
        %1819 = vmatprep.subr.mxu0 0.0
        %1820 = vmatpush1.msra.mxu0 0.0
        %1821 = vmatprep.subr.mxu0 0.0
        %1822 = vmatpush1.msra.mxu0 0.0
        %1823 = vmatprep.subr.mxu0 0.0
        %1824 = vmatpush1.msra.mxu0 0.0
        %1825 = vmatprep.subr.mxu0 0.0
        %1826 = vmatpush1.msra.mxu0 0.0
        %1827 = vmatprep.subr.mxu0 0.0
        %1828 = vmatpush1.msra.mxu0 0.0
        %1829 = vmatprep.subr.mxu0 0.0
        %1830 = vmatpush1.msra.mxu0 0.0
        %1831 = vmatprep.subr.mxu0 0.0
        %1832 = vmatpush1.msra.mxu0 0.0
        %1833 = vmatprep.subr.mxu0 0.0
        %1834 = vmatpush1.msra.mxu0 0.0
        %1835 = vmatprep.subr.mxu0 0.0
        %1836 = vmatpush1.msra.mxu0 0.0
        %1837 = vmatprep.subr.mxu0 0.0
        %1838 = vmatpush1.msra.mxu0 0.0
        %1839 = vmatprep.subr.mxu0 0.0
        %1840 = vmatpush1.msra.mxu0 0.0
        %1841 = vmatprep.subr.mxu0 0.0
        %1842 = vmatpush1.msra.mxu0 0.0
        %1843 = vmatprep.subr.mxu0 0.0
        %1844 = vmatpush1.msra.mxu0 0.0
        %1845 = vmatprep.subr.mxu0 0.0
        %1846 = vmatpush1.msra.mxu0 0.0
        %1847 = vmatprep.subr.mxu0 0.0
        %1848 = vmatpush1.msra.mxu0 0.0
        %1849 = vmatprep.subr.mxu0 0.0
        %1850 = vmatpush1.msra.mxu0 0.0
        %1851 = vmatprep.subr.mxu0 0.0
        %1852 = vmatpush1.msra.mxu0 0.0
        %1853 = vmatprep.subr.mxu0 0.0
        %1854 = vmatpush1.msra.mxu0 0.0
        %1855 = vmatprep.subr.mxu0 0.0
        %1856 = vmatpush1.msra.mxu0 0.0
        %1857 = vmatprep.subr.mxu0 0.0
        %1858 = vmatpush1.msra.mxu0 0.0
        %1859 = vmatprep.subr.mxu0 0.0
        %1860 = vmatpush1.msra.mxu0 0.0
        %1861 = vmatprep.subr.mxu0 0.0
        %1862 = vmatpush1.msra.mxu0 0.0
        %1863 = vmatprep.subr.mxu0 0.0
        %1864 = vmatpush1.msra.mxu0 0.0
        %1865 = vmatprep.mubr.f32.mxu0 0.0
        %1866 = vmatmul.mubr.f32.gmra.mrb[0].mxu0 %v1799
        %v1867 = vpop.f32.mrb[0].mxu0
        %v1868 = vadd.f32 0.0, %v1867
        %v1869 = vpop.f32.mrb[0].mxu0
        %v1870 = vadd.f32 0.0, %v1869
        %1871 = vdwg.mxu0
        %v1872 = vadd.f32 %v1786, %v1868
        %v1873 = vadd.f32 %v1787, %v1870
        %1875 = vset.pattern.permute.xlu0 0
        %1876 = vperm.xlu0 %1875, %v255
        %v1877 = vpop.permute.xlu0 %1876
        %v1879 = vadd.f32 %v1872, %v1877
        %v1880 = vadd.f32 %v1873, %v1877
        %1881 = vst [vmem:[%s244] sm:$0xff] %v1879
        %1882 = vst [vmem:[%s244 + $0x8] sm:$0xff] %v1880
        %s1883 = sand.u32 %s159, 1
        %s1884 = scalar_lea.sflag [#allocation3], %s1883
        %s1885 = sand.u32 %s159, 1
        %s1886 = smul.addr %s1885, 16
        %s1887 = scalar_lea.vmem [#allocation2], %s1886
        // Predicated region
        $region45: #{tpu_custom_call.1} parent=43 // pred_check
          %p1888 = pneg %p169
        $region46: #{tpu_custom_call.1} parent=43 // pred_check_branch
          %1890 = sbr.rel (%p1888) target = $region48
        $region47: #{tpu_custom_call.1} parent=43 // pred_region
          %s1892 = ssub.s32 256, 256
          %1893 = vsyncadd %s1884, %s1892
          %s1894 = smul.addr %s20, 2
          %s1895 = smul.addr %s1894, 128
          %s1896 = scalar_lea.hbm %s6, %s1895
          %s1898 = sshll.u32 %s1887, 4
          %s1899 = int_to_ptr.vmem [resolvable:$true] %s1898
          %1901 = dma.vmem_to_hbm [thread:$0]  %s1899, 256, %s1896, %s1884
        $region48: #{tpu_custom_call.1} parent=43 // pred_fallthru
          _
      $region44: #{tpu_custom_call.1} parent=5 // pred_fallthru
        _
      %p1902 = scmp.le.s32.totalorder 2, %s15
      // Predicated region
      $region49: #{tpu_custom_call.1} parent=5 // pred_check
        %p1903 = pneg %p1902
      $region50: #{tpu_custom_call.1} parent=5 // pred_check_branch
        %1905 = sbr.rel (%p1903) target = $region52
      $region51: #{tpu_custom_call.1} parent=5 // pred_region
        %s1906 = ssub.s32 %s15, 2
        // Predicated region
        $region53: #{tpu_custom_call.1} parent=51 // pred_check
          %p1907 = pneg %p175
        $region54: #{tpu_custom_call.1} parent=51 // pred_check_branch
          %1909 = sbr.rel (%p1907) target = $region56
        $region55: #{tpu_custom_call.1} parent=51 // pred_region
          %s1910 = sand.u32 %s160, 1
          %s1911 = scalar_lea.sflag [#allocation3], %s1910
          %s1912 = sand.u32 %s160, 1
          %s1913 = smul.addr %s1912, 16
          %s1914 = scalar_lea.vmem [#allocation2], %s1913
          %1915 = dma.done %s1911, 256
        $region56: #{tpu_custom_call.1} parent=51 // pred_fallthru
          _
      $region52: #{tpu_custom_call.1} parent=5 // pred_fallthru
        _
    $region6: #{tpu_custom_call.1} parent=1 // loop_footer
      %s19 = sadd.s32 1, %s15
    $region7: #{tpu_custom_call.1} parent=1 // loop_footer_branch
      %14 = sbr.rel target = $region3
    $region8: #{tpu_custom_call.1} parent=1 // loop_exit
      _
    %1916 = vsyncpa [#allocation3], 1
    %s1917 = scalar_lea.sflag [#allocation3], 1
    %1918 = vsyncpa %s1917, 1

</llo_original>
